<compile_context>
chip_gen: v7x
topology: tpu7x:2x2x1
jax: 0.10.0
libtpu: 0.0.40
codegen_flags: <defaults>
</compile_context>

<pallas_src>
import functools

import jax
import jax.numpy as jnp
from jax.experimental import pallas as pl
from jax.experimental.pallas import tpu as pltpu

_BN_EPS = 1e-5
_VMEM_TILE_BUDGET = 20 << 20  # headroom under 32 MiB scoped default / 64 MiB v7x VMEM


# ----------------------------------------------------------------------------
# Shared elementwise helpers (used identically inside kernels and in reference)
# ----------------------------------------------------------------------------
def _sigmoid(x):
    return 1.0 / (1.0 + jnp.exp(-x))


def _mish(x):
    # Mish(x) = x * tanh(softplus(x)); overflow-safe softplus formulation.
    sp = jnp.maximum(x, 0.0) + jnp.log(1.0 + jnp.exp(-jnp.abs(x)))
    return x * jnp.tanh(sp)


# ----------------------------------------------------------------------------
# Plain-JAX glue: convolutions (ConvNormAct) and bilinear resize matrices
# ----------------------------------------------------------------------------
def _conv2d(x, w, *, stride=1, dilation=1, padding=0):
    return jax.lax.conv_general_dilated(
        x, w,
        window_strides=(stride, stride),
        padding=[(padding, padding), (padding, padding)],
        rhs_dilation=(dilation, dilation),
        dimension_numbers=("NCHW", "OIHW", "NCHW"),
    )


def _conv_norm_act(x, w, *, stride=1, dilation=1, apply_norm=True,
                   apply_act=True, bias=None):
    """ConvNormAct: conv -> (BatchNorm, eval mode, default stats) -> (Mish)."""
    k = w.shape[-1]
    pad = dilation * (k // 2)
    y = _conv2d(x, w, stride=stride, dilation=dilation, padding=pad)
    if bias is not None:
        y = y + bias[None, :, None, None]
    if apply_norm:
        # Freshly-initialized BatchNorm2d in eval mode: gamma=1, beta=0, mean=0, var=1.
        y = y * (1.0 / jnp.sqrt(1.0 + _BN_EPS))
    if apply_act:
        y = _mish(y)
    return y


def _bilinear_matrix(out_size, in_size, dtype=jnp.float32):
    """1-D interpolation matrix M (out_size, in_size) for align_corners=True."""
    if in_size == 1:
        return jnp.ones((out_size, 1), dtype)
    if out_size == 1:
        return jnp.zeros((1, in_size), dtype).at[0, 0].set(1.0)
    pos = jnp.arange(out_size, dtype=dtype) * ((in_size - 1) / (out_size - 1))
    lo = jnp.clip(jnp.floor(pos).astype(jnp.int32), 0, in_size - 2)
    frac = pos - lo.astype(dtype)
    rows = jnp.arange(out_size)
    m = jnp.zeros((out_size, in_size), dtype)
    m = m.at[rows, lo].add(1.0 - frac)
    m = m.at[rows, lo + 1].add(frac)
    return m


def _bilinear_upsample(x, out_h, out_w):
    """x: (N,C,H,W) -> (N,C,out_h,out_w), bilinear, align_corners=True."""
    ah = _bilinear_matrix(out_h, x.shape[2])
    aw = _bilinear_matrix(out_w, x.shape[3])
    y = jnp.einsum("hH,ncHW->nchW", ah, x)
    return jnp.einsum("nchW,wW->nchw", y, aw)


def _pick_lane_tile(total, bytes_per_lane, budget_bytes=_VMEM_TILE_BUDGET):
    """Largest multiple-of-128 lane tile that divides `total` and keeps the
    double-buffered working set within the VMEM budget.  Falls back to the full
    extent (which BlockSpec always allows) for small/odd sizes."""
    for t in (1024, 512, 256, 128):
        if total % t == 0 and 2 * t * bytes_per_lane <= budget_bytes:
            return t
    return total


# ----------------------------------------------------------------------------
# Pallas kernel 1: channel attention (tiled pool + weighted mix + 1x1 MLP + sigmoid)
# ----------------------------------------------------------------------------
def _channel_attn_kernel(inv_sd, fw_ref, deep_ref, w1t_ref, w2t_ref, cw_ref,
                         sum_ref, max_ref):
    # Grid: (N, Sd // tsd); batch axis "parallel", spatial-reduction axis last
    # ("arbitrary"), so per-step VMEM stays ~2*C2*tsd*4B at any deep-feature size.
    # fw_ref  : SMEM (2,)          sigmoid(feature_weight)
    # deep_ref: VMEM (1, C2, tsd)  deep-feature tile, spatial pixels on the lane axis
    # w1t_ref : VMEM (C2, C2)      first 1x1 conv weight, pre-transposed to (in, out)
    # w2t_ref : VMEM (C2, Ctot)    second 1x1 conv weight, pre-transposed to (in, out)
    # cw_ref  : VMEM (1, 1, Ctot)  sigmoided channel weight (written on last step)
    # sum/max : VMEM (1, C2)       running spatial sum / running spatial max
    s = pl.program_id(1)

    @pl.when(s == 0)
    def _():
        sum_ref[...] = jnp.zeros(sum_ref.shape, sum_ref.dtype)
        max_ref[...] = jnp.full(max_ref.shape, -jnp.inf, max_ref.dtype)

    x = deep_ref[...]                                             # (1, C2, tsd)
    sum_ref[...] += jnp.sum(x, axis=-1)                           # adaptive_avg_pool2d
    max_ref[...] = jnp.maximum(max_ref[...], jnp.max(x, axis=-1))  # adaptive_max_pool2d

    @pl.when(s == pl.num_programs(1) - 1)
    def _():
        avg = sum_ref[...] * inv_sd                                # (1, C2)
        chf = avg * fw_ref[0] + max_ref[...] * fw_ref[1]           # (1, C2)
        # 1x1 convs as MXU matmuls against (in, out)-layout weights.
        h = _mish(jnp.dot(chf, w1t_ref[...],
                          preferred_element_type=jnp.float32,
                          precision=jax.lax.Precision.HIGHEST))    # (1, C2)
        logits = jnp.dot(h, w2t_ref[...],
                         preferred_element_type=jnp.float32,
                         precision=jax.lax.Precision.HIGHEST)      # (1, Ctot)
        cw_ref[...] = _sigmoid(logits).reshape(cw_ref.shape)


# ----------------------------------------------------------------------------
# Pallas kernel 2: fused concat * sigmoid(spatial_weight) * channel_weight
# ----------------------------------------------------------------------------
def _fuse_kernel(ds_ref, cur_ref, dp_ref, swl_ref, cw_ref, out_ref):
    # Grid: (N, S // ts); both axes "parallel" (disjoint output tiles -> megacore).
    # ds_ref  : (1, C0, ts)   conv_downsample(shallow) tile
    # cur_ref : (1, C1, ts)   current-feature tile
    # dp_ref  : (1, C2, ts)   bilinear-upsampled deep-feature tile
    # swl_ref : (1, 1, ts)    spatial_weight_conv output (pre-sigmoid; sigmoid fused)
    # cw_ref  : (1, Ctot, 1)  channel weight (already sigmoided)
    # out_ref : (1, Ctot, ts) lane-dense output slab; concat never hits HBM.
    sw = _sigmoid(swl_ref[0])          # (1, ts)   broadcasts over channels (sublanes)
    cw = cw_ref[0]                     # (Ctot, 1) broadcasts over spatial (lanes)
    c0 = ds_ref.shape[1]
    c1 = cur_ref.shape[1]
    c2 = dp_ref.shape[1]
    # NOTE: channel-group boundaries (C0, C0+C1) are sublane(8)-aligned for the
    # default (8,16,32) config; other configs still lower correctly (masked stores).
    out_ref[0, 0:c0, :] = ds_ref[0] * sw * cw[0:c0, :]
    out_ref[0, c0:c0 + c1, :] = cur_ref[0] * sw * cw[c0:c0 + c1, :]
    out_ref[0, c0 + c1:c0 + c1 + c2, :] = dp_ref[0] * sw * cw[c0 + c1:c0 + c1 + c2, :]


# ----------------------------------------------------------------------------
# Forward pass (Pallas path)
# ----------------------------------------------------------------------------
def ssia_fuse_forward(params, shallow, current, deep):
    N, C0 = shallow.shape[0], shallow.shape[1]
    C1, Hc, Wc = current.shape[1], current.shape[2], current.shape[3]
    C2, Hd, Wd = deep.shape[1], deep.shape[2], deep.shape[3]
    Ctot = C0 + C1 + C2
    S = Hc * Wc
    Sd = Hd * Wd

    # ---- spatial attention branch (XLA convs; see TODO at top) ----
    f3 = _conv_norm_act(shallow, params["conv3x3_w"])
    f5 = _conv_norm_act(shallow, params["conv5x5_w"])
    spatial_feature = jnp.concatenate([f3, f5], axis=1)                 # (N,2,Hs,Ws)
    sw_logits = _conv_norm_act(spatial_feature, params["spatial_w"], stride=2,
                               apply_norm=False, apply_act=False,
                               bias=params["spatial_b"])                # (N,1,Hc,Wc)
    # sigmoid of the spatial weight is fused into the Pallas fusion kernel.

    # ---- channel attention branch: one fused, spatially-tiled Pallas kernel ----
    deep2d = deep.reshape(N, C2, Sd)            # contiguous reshape only, no transpose
    fw_sig = _sigmoid(params["feature_weight"].astype(jnp.float32))     # (2,)
    w1t = params["cw1_w"].T                     # (in, out) layout for MXU dot
    w2t = params["cw2_w"].T                     # (C2, Ctot)

    tsd = _pick_lane_tile(Sd, 4 * C2)
    ca_cost = pl.CostEstimate(
        flops=int(2 * N * C2 * Sd + 2 * N * (C2 * C2 + C2 * Ctot)),
        transcendentals=int(N * (2 * C2 + Ctot)),
        bytes_accessed=int(4 * (N * C2 * Sd + C2 * C2 + C2 * Ctot + N * Ctot + 2)),
    )
    channel_weight = pl.pallas_call(
        functools.partial(_channel_attn_kernel, 1.0 / float(Sd)),
        out_shape=jax.ShapeDtypeStruct((N, 1, Ctot), jnp.float32),
        grid=(N, Sd // tsd),
        in_specs=[
            pl.BlockSpec(memory_space=pltpu.MemorySpace.SMEM),           # (2,) weights
            pl.BlockSpec((1, C2, tsd), lambda n, s: (n, 0, s)),
            pl.BlockSpec((C2, C2), lambda n, s: (0, 0)),
            pl.BlockSpec((C2, Ctot), lambda n, s: (0, 0)),
        ],
        out_specs=pl.BlockSpec((1, 1, Ctot), lambda n, s: (n, 0, 0)),
        scratch_shapes=[pltpu.VMEM((1, C2), jnp.float32),
                        pltpu.VMEM((1, C2), jnp.float32)],
        compiler_params=pltpu.CompilerParams(
            dimension_semantics=("parallel", "arbitrary")),
        cost_estimate=ca_cost,
    )(fw_sig, deep2d, w1t, w2t)                                          # (N,1,Ctot)

    # ---- fusion branch ----
    ds = _conv_norm_act(shallow, params["down_w"], stride=2)             # (N,C0,Hc,Wc)
    # TODO(synk): fold the bilinear (Hc,Hd)/(Wc,Wd) interpolation matrices into the
    # fuse kernel as small MXU dots to avoid the deep_up HBM write + re-read.
    deep_up = _bilinear_upsample(deep, Hc, Wc)                           # (N,C2,Hc,Wc)

    ts = _pick_lane_tile(S, 4 * (2 * Ctot + 2))
    fuse_cost = pl.CostEstimate(
        flops=int(3 * N * Ctot * S),
        transcendentals=int(N * S),
        bytes_accessed=int(4 * (N * S * (C0 + C1 + C2 + 1 + Ctot) + N * Ctot)),
    )
    out = pl.pallas_call(
        _fuse_kernel,
        out_shape=jax.ShapeDtypeStruct((N, Ctot, S), jnp.float32),
        grid=(N, S // ts),
        in_specs=[
            pl.BlockSpec((1, C0, ts), lambda n, s: (n, 0, s)),
            pl.BlockSpec((1, C1, ts), lambda n, s: (n, 0, s)),
            pl.BlockSpec((1, C2, ts), lambda n, s: (n, 0, s)),
            pl.BlockSpec((1, 1, ts), lambda n, s: (n, 0, s)),
            pl.BlockSpec((1, Ctot, 1), lambda n, s: (n, 0, 0)),
        ],
        out_specs=pl.BlockSpec((1, Ctot, ts), lambda n, s: (n, 0, s)),
        compiler_params=pltpu.CompilerParams(
            dimension_semantics=("parallel", "parallel")),
        cost_estimate=fuse_cost,
    )(
        ds.reshape(N, C0, S),
        current.reshape(N, C1, S),
        deep_up.reshape(N, C2, S),
        sw_logits.reshape(N, 1, S),
        channel_weight.reshape(N, Ctot, 1),
    )
    return out.reshape(N, Ctot, Hc, Wc)


# ----------------------------------------------------------------------------
# Pure-JAX reference (same math, no Pallas) for self-checking
# ----------------------------------------------------------------------------
def _reference_forward(params, shallow, current, deep):
    N, C0 = shallow.shape[0], shallow.shape[1]
    C1, Hc, Wc = current.shape[1], current.shape[2], current.shape[3]
    C2 = deep.shape[1]

    f3 = _conv_norm_act(shallow, params["conv3x3_w"])
    f5 = _conv_norm_act(shallow, params["conv5x5_w"])
    spatial_feature = jnp.concatenate([f3, f5], axis=1)
    spatial_weight = _sigmoid(_conv_norm_act(spatial_feature, params["spatial_w"],
                                             stride=2, apply_norm=False,
                                             apply_act=False, bias=params["spatial_b"]))

    avg = deep.mean(axis=(2, 3))                        # (N,C2)
    mx = deep.max(axis=(2, 3))                          # (N,C2)
    w = _sigmoid(params["feature_weight"])
    chf = avg * w[0] + mx * w[1]                        # (N,C2)
    h = jnp.sum(chf[:, None, :] * params["cw1_w"][None, :, :], axis=-1)
    h = _mish(h)
    cwl = jnp.sum(h[:, None, :] * params["cw2_w"][None, :, :], axis=-1)
    channel_weight = _sigmoid(cwl)[:, :, None, None]    # (N,Ctot,1,1)

    ds = _conv_norm_act(shallow, params["down_w"], stride=2)
    deep_up = _bilinear_upsample(deep, Hc, Wc)
    fused = jnp.concatenate([ds, current, deep_up], axis=1)
    return fused * spatial_weight * channel_weight


# ----------------------------------------------------------------------------
# Parameter init (matches the PyTorch module's layer shapes)
# ----------------------------------------------------------------------------
def init_params(key, in_channels):
    C0, _, C2 = in_channels
    Ctot = sum(in_channels)
    ks = jax.random.split(key, 6)
    return {
        "conv3x3_w": 0.1 * jax.random.normal(ks[0], (1, C0, 3, 3), jnp.float32),
        "conv5x5_w": 0.1 * jax.random.normal(ks[1], (1, C0, 5, 5), jnp.float32),
        "spatial_w": 0.1 * jax.random.normal(ks[2], (1, 2, 3, 3), jnp.float32),
        "spatial_b": jnp.zeros((1,), jnp.float32),
        "feature_weight": jnp.ones((2,), jnp.float32),   # nn.Parameter(torch.ones(2))
        "cw1_w": 0.1 * jax.random.normal(ks[3], (C2, C2), jnp.float32),     # (out,in)
        "cw2_w": 0.1 * jax.random.normal(ks[4], (Ctot, C2), jnp.float32),   # (out,in)
        "down_w": 0.1 * jax.random.normal(ks[5], (C0, C0, 3, 3), jnp.float32),
    }


if __name__ == "__main__":
    key = jax.random.PRNGKey(0)
    in_channels = [8, 16, 32]                 # [shallow, current, deep] channels
    N = 2
    k_s, k_c, k_d, k_p = jax.random.split(key, 4)

    shallow = jax.random.normal(k_s, (N, in_channels[0], 16, 16), jnp.float32)
    current = jax.random.normal(k_c, (N, in_channels[1], 8, 8), jnp.float32)
    deep = jax.random.normal(k_d, (N, in_channels[2], 4, 4), jnp.float32)
    params = init_params(k_p, in_channels)

    out = ssia_fuse_forward(params, shallow, current, deep)
    jax.block_until_ready(out)

    ref = _reference_forward(params, shallow, current, deep)
    assert out.shape == (N, sum(in_channels), 8, 8)
    assert jnp.allclose(out, ref, atol=1e-4, rtol=1e-4)

    print("KERNEL_OK")
</pallas_src>

<mosaic_0001>
module attributes {stable_mosaic.version = 11 : i64} {
  func.func @_channel_attn_kernel(%arg0: i32, %arg1: i32, %arg2: memref<2xf32, #tpu.memory_space<smem>>, %arg3: memref<1x32x16xf32, #tpu.memory_space<vmem>>, %arg4: memref<32x32xf32, #tpu.memory_space<vmem>>, %arg5: memref<32x56xf32, #tpu.memory_space<vmem>>, %arg6: memref<1x1x56xf32, #tpu.memory_space<vmem>>, %arg7: memref<1x32xf32, #tpu.memory_space<vmem>>, %arg8: memref<1x32xf32, #tpu.memory_space<vmem>>) attributes {dimension_semantics = [#tpu.dimension_semantics<parallel>, #tpu.dimension_semantics<arbitrary>], iteration_bounds = array<i64: 2, 1>, scalar_prefetch = 0 : i64, scratch_operands = 2 : i64, tpu.core_type = #tpu.core_type<tc>, window_params = [{transform_indices = @transform_0, window_bounds = array<i64: 2>}, {transform_indices = @transform_1, window_bounds = array<i64: 1, 32, 16>}, {pipeline_mode = #tpu.pipeline_mode<synchronous>, transform_indices = @transform_2, window_bounds = array<i64: 32, 32>}, {pipeline_mode = #tpu.pipeline_mode<synchronous>, transform_indices = @transform_3, window_bounds = array<i64: 32, 56>}, {transform_indices = @transform_4, window_bounds = array<i64: 1, 1, 56>}]} {
    %c0_i32 = arith.constant 0 : i32
    %0 = arith.cmpi eq, %arg1, %c0_i32 : i32
    %1 = arith.extui %0 : i1 to i32
    %c0_i32_0 = arith.constant 0 : i32
    %2 = arith.cmpi ne, %1, %c0_i32_0 : i32
    scf.if %2 {
      %cst_14 = arith.constant 0.000000e+00 : f32
      %15 = vector.broadcast %cst_14 : f32 to vector<1x32xf32>
      %c0_15 = arith.constant 0 : index
      %c0_16 = arith.constant 0 : index
      %16 = vector.load %arg7[%c0_15, %c0_16] : memref<1x32xf32, #tpu.memory_space<vmem>>, vector<1x32xf32>
      tpu.vector_store %arg7[%c0_15, %c0_16], %15 {strides = array<i32>} : memref<1x32xf32, #tpu.memory_space<vmem>>, vector<1x32xf32>,
      %cst_17 = arith.constant 0xFF800000 : f32
      %17 = vector.broadcast %cst_17 : f32 to vector<1x32xf32>
      %c0_18 = arith.constant 0 : index
      %c0_19 = arith.constant 0 : index
      %18 = vector.load %arg8[%c0_18, %c0_19] : memref<1x32xf32, #tpu.memory_space<vmem>>, vector<1x32xf32>
      tpu.vector_store %arg8[%c0_18, %c0_19], %17 {strides = array<i32>} : memref<1x32xf32, #tpu.memory_space<vmem>>, vector<1x32xf32>,
    } else {
    }
    %c0 = arith.constant 0 : index
    %c0_1 = arith.constant 0 : index
    %c0_2 = arith.constant 0 : index
    %3 = vector.load %arg3[%c0, %c0_1, %c0_2] : memref<1x32x16xf32, #tpu.memory_space<vmem>>, vector<1x32x16xf32>
    %c0_3 = arith.constant 0 : index
    %c0_4 = arith.constant 0 : index
    %4 = vector.load %arg7[%c0_3, %c0_4] : memref<1x32xf32, #tpu.memory_space<vmem>>, vector<1x32xf32>
    %cst = arith.constant dense<0.000000e+00> : vector<1x32xf32>
    %5 = vector.multi_reduction <add>, %3, %cst [2] : vector<1x32x16xf32> to vector<1x32xf32>
    %6 = arith.addf %4, %5 : vector<1x32xf32>
    %c0_5 = arith.constant 0 : index
    %c0_6 = arith.constant 0 : index
    %7 = vector.load %arg7[%c0_5, %c0_6] : memref<1x32xf32, #tpu.memory_space<vmem>>, vector<1x32xf32>
    tpu.vector_store %arg7[%c0_5, %c0_6], %6 {strides = array<i32>} : memref<1x32xf32, #tpu.memory_space<vmem>>, vector<1x32xf32>,
    %c0_7 = arith.constant 0 : index
    %c0_8 = arith.constant 0 : index
    %8 = vector.load %arg8[%c0_7, %c0_8] : memref<1x32xf32, #tpu.memory_space<vmem>>, vector<1x32xf32>
    %cst_9 = arith.constant dense<0xFF800000> : vector<1x32xf32>
    %9 = vector.multi_reduction <maximumf>, %3, %cst_9 [2] : vector<1x32x16xf32> to vector<1x32xf32>
    %10 = arith.maximumf %8, %9 : vector<1x32xf32>
    %c0_10 = arith.constant 0 : index
    %c0_11 = arith.constant 0 : index
    %11 = vector.load %arg8[%c0_10, %c0_11] : memref<1x32xf32, #tpu.memory_space<vmem>>, vector<1x32xf32>
    tpu.vector_store %arg8[%c0_10, %c0_11], %10 {strides = array<i32>} : memref<1x32xf32, #tpu.memory_space<vmem>>, vector<1x32xf32>,
    %c0_i32_12 = arith.constant 0 : i32
    %12 = arith.cmpi eq, %arg1, %c0_i32_12 : i32
    %13 = arith.extui %12 : i1 to i32
    %c0_i32_13 = arith.constant 0 : i32
    %14 = arith.cmpi ne, %13, %c0_i32_13 : i32
    scf.if %14 {
      %c0_14 = arith.constant 0 : index
      %c0_15 = arith.constant 0 : index
      %15 = vector.load %arg7[%c0_14, %c0_15] : memref<1x32xf32, #tpu.memory_space<vmem>>, vector<1x32xf32>
      %cst_16 = arith.constant 6.250000e-02 : f32
      %16 = vector.broadcast %cst_16 : f32 to vector<1x32xf32>
      %17 = arith.mulf %15, %16 : vector<1x32xf32>
      %c0_17 = arith.constant 0 : index
      %18 = memref.load %arg2[%c0_17] : memref<2xf32, #tpu.memory_space<smem>>
      %19 = vector.broadcast %18 : f32 to vector<1x32xf32>
      %20 = arith.mulf %17, %19 : vector<1x32xf32>
      %c0_18 = arith.constant 0 : index
      %c0_19 = arith.constant 0 : index
      %21 = vector.load %arg8[%c0_18, %c0_19] : memref<1x32xf32, #tpu.memory_space<vmem>>, vector<1x32xf32>
      %c1 = arith.constant 1 : index
      %22 = memref.load %arg2[%c1] : memref<2xf32, #tpu.memory_space<smem>>
      %23 = vector.broadcast %22 : f32 to vector<1x32xf32>
      %24 = arith.mulf %21, %23 : vector<1x32xf32>
      %25 = arith.addf %20, %24 : vector<1x32xf32>
      %c0_20 = arith.constant 0 : index
      %c0_21 = arith.constant 0 : index
      %26 = vector.load %arg4[%c0_20, %c0_21] : memref<32x32xf32, #tpu.memory_space<vmem>>, vector<32x32xf32>
      %cst_22 = arith.constant dense<0.000000e+00> : vector<1x32xf32>
      %27 = tpu.matmul %25, %26, %cst_22 {dimension_numbers = #tpu.dot_dimension_numbers<[1], [0], [0], [1], [0, 0, 1, 1], [], []>, precision = #tpu.contract_precision<fp32>} : vector<1x32xf32>, vector<32x32xf32>, vector<1x32xf32> -> vector<1x32xf32>
      %cst_23 = arith.constant 0.000000e+00 : f32
      %28 = vector.broadcast %cst_23 : f32 to vector<1x32xf32>
      %29 = arith.maximumf %27, %28 : vector<1x32xf32>
      %30 = math.absf %27 : vector<1x32xf32>
      %cst_24 = arith.constant 0.000000e+00 : f32
      %31 = vector.broadcast %cst_24 : f32 to vector<1x32xf32>
      %32 = arith.subf %31, %30 : vector<1x32xf32>
      %33 = math.exp %32 : vector<1x32xf32>
      %cst_25 = arith.constant 1.000000e+00 : f32
      %34 = vector.broadcast %cst_25 : f32 to vector<1x32xf32>
      %35 = arith.addf %34, %33 : vector<1x32xf32>
      %36 = math.log %35 : vector<1x32xf32>
      %37 = arith.addf %29, %36 : vector<1x32xf32>
      %38 = math.tanh %37 : vector<1x32xf32>
      %39 = arith.mulf %27, %38 : vector<1x32xf32>
      %c0_26 = arith.constant 0 : index
      %c0_27 = arith.constant 0 : index
      %40 = vector.load %arg5[%c0_26, %c0_27] : memref<32x56xf32, #tpu.memory_space<vmem>>, vector<32x56xf32>
      %cst_28 = arith.constant dense<0.000000e+00> : vector<1x56xf32>
      %41 = tpu.matmul %39, %40, %cst_28 {dimension_numbers = #tpu.dot_dimension_numbers<[1], [0], [0], [1], [0, 0, 1, 1], [], []>, precision = #tpu.contract_precision<fp32>} : vector<1x32xf32>, vector<32x56xf32>, vector<1x56xf32> -> vector<1x56xf32>
      %cst_29 = arith.constant 0.000000e+00 : f32
      %42 = vector.broadcast %cst_29 : f32 to vector<1x56xf32>
      %43 = arith.subf %42, %41 : vector<1x56xf32>
      %44 = math.exp %43 : vector<1x56xf32>
      %cst_30 = arith.constant 1.000000e+00 : f32
      %45 = vector.broadcast %cst_30 : f32 to vector<1x56xf32>
      %46 = arith.addf %45, %44 : vector<1x56xf32>
      %cst_31 = arith.constant 1.000000e+00 : f32
      %47 = vector.broadcast %cst_31 : f32 to vector<1x56xf32>
      %48 = arith.divf %47, %46 : vector<1x56xf32>
      %49 = vector.shape_cast %48 : vector<1x56xf32> to vector<1x1x56xf32>
      %c0_32 = arith.constant 0 : index
      %c0_33 = arith.constant 0 : index
      %c0_34 = arith.constant 0 : index
      %50 = vector.load %arg6[%c0_32, %c0_33, %c0_34] : memref<1x1x56xf32, #tpu.memory_space<vmem>>, vector<1x1x56xf32>
      tpu.vector_store %arg6[%c0_32, %c0_33, %c0_34], %49 {strides = array<i32>} : memref<1x1x56xf32, #tpu.memory_space<vmem>>, vector<1x1x56xf32>,
    } else {
    }
    return
  }
  func.func @transform_0(%arg0: i32, %arg1: i32) -> i32 {
    %c0_i32 = arith.constant 0 : i32
    %c0_i32_0 = arith.constant 0 : i32
    return %c0_i32 : i32
  }
  func.func @transform_1(%arg0: i32, %arg1: i32) -> (i32, i32, i32) {
    %c0_i32 = arith.constant 0 : i32
    %c0_i32_0 = arith.constant 0 : i32
    return %arg0, %c0_i32, %arg1 : i32, i32, i32
  }
  func.func @transform_2(%arg0: i32, %arg1: i32) -> (i32, i32) {
    %c0_i32 = arith.constant 0 : i32
    %c0_i32_0 = arith.constant 0 : i32
    %c0_i32_1 = arith.constant 0 : i32
    return %c0_i32, %c0_i32_0 : i32, i32
  }
  func.func @transform_3(%arg0: i32, %arg1: i32) -> (i32, i32) {
    %c0_i32 = arith.constant 0 : i32
    %c0_i32_0 = arith.constant 0 : i32
    %c0_i32_1 = arith.constant 0 : i32
    return %c0_i32, %c0_i32_0 : i32, i32
  }
  func.func @transform_4(%arg0: i32, %arg1: i32) -> (i32, i32, i32) {
    %c0_i32 = arith.constant 0 : i32
    %c0_i32_0 = arith.constant 0 : i32
    %c0_i32_1 = arith.constant 0 : i32
    return %arg0, %c0_i32, %c0_i32_0 : i32, i32, i32
  }
}

</mosaic_0001>

<llo_original>
// kernel: tpu_custom_call.1
$region0: #{tpu_custom_call.1}
  #allocation0 [shape = 'u32[]', space=smem, size = 0x4, offset = 0x4, fixed_abs, tag = 'smem constant byte address 0x4 - core index']
  #allocation1 [shape = 'u32[144,128]{1,0:T(1,128)}', space=vmem, size = 0x12000, scoped, tag = 'internal scratch']
  #allocation2 [shape = 'f32[1,32]{1,0:T(1,128)}', space=vmem, size = 0x200, scoped, tag = 'scratch operand']
  #allocation3 [shape = 'f32[1,32]{1,0:T(1,128)}', space=vmem, size = 0x200, scoped, tag = 'scratch operand']
  %s0 = inlined_call_operand.vmem [shape: f32[2], index: 0, kind: input, shape index: {}]
  %s1 = inlined_call_operand.vmem [shape: f32[2,32,16], index: 1, kind: input, shape index: {}]
  %s2 = inlined_call_operand.vmem [shape: f32[32,32], index: 2, kind: input, shape index: {}]
  %s3 = inlined_call_operand.vmem [shape: f32[32,56], index: 3, kind: input, shape index: {}]
  %s4 = inlined_call_operand.hbm [shape: f32[2,1,56], index: 4, kind: output, shape index: {}]
  %s5 = sld [smem:[#allocation0]]
  $region61: #{tpu_custom_call.1} parent=0
    _
  %s7 = ssub.s32 1, %s5
  %s8 = scalar_select 0, %s7, %s5
  $region1: #{tpu_custom_call.1} parent=0
    #allocation4 [shape = 'u8[512]{0}', space=smem, size = 0x200, scoped, tag = 'input window, operand 0, single buffered']
    #allocation5 [shape = 's32[2]{0}', space=sflag, size = 0x8, scoped, tag = 'scoped memory for tpu_custom_call.1']
    #allocation6 [shape = 's32[2]{0}', space=sflag, size = 0x8, scoped, tag = 'scoped memory for tpu_custom_call.1']
    #allocation7 [shape = 'u8[1024]{0}', space=vmem, size = 0x400, scoped, tag = 'output window, operand 0']
    %9 = vsyncpa [#allocation6], 0
    %10 = vsyncpa [#allocation5], 0
    %s11 = scalar_lea.sflag [#allocation5], 1
    %12 = vsyncpa %s11, 0
    loop: start=0, step=1, limit=4
    $region2: #{tpu_custom_call.1} parent=1 // loop_pre_header
      _
    $region3: #{tpu_custom_call.1} parent=1 // loop_header
      %s14 = sphi 0, %s18
      %p15 = scmp.ge.s32.totalorder %s14, 4
      %s21 = sphi 0, %s33
      %s22 = sphi 0, %s29
      %s23 = sphi 0, %s21
      %s24 = sphi 0, %s22
      %s25 = sphi 0, %s23
      %s26 = sphi 0, %s24
      %s34 = sphi 0, %s34
      %s36 = sphi 0, %s34
      %s37 = sphi 0, %s36
      %s51 = sphi 0, %s37
      %s59 = sphi 0, %s61
      %s62 = sphi 0, %s59
      %s63 = sphi 0, %s62
      %s79 = sphi 0, %s63
      %s83 = sphi 0, %s83
      %s85 = sphi 0, %s83
      %s86 = sphi 0, %s85
      %s100 = sphi 0, %s86
      %s104 = sphi 0, %s104
      %s106 = sphi 0, %s104
      %s107 = sphi 0, %s106
      %s121 = sphi 0, %s107
      %s127 = sphi 0, %s129
      %s130 = sphi 0, %s127
      %s131 = sphi 0, %s130
      %s147 = sphi 0, %s131
    $region4: #{tpu_custom_call.1} parent=1 // loop_header_branch
      %17 = sbr.rel (%p15) target = $region8
    $region5: #{tpu_custom_call.1} parent=1 // loop_body
      %s19 = ssub.s32 %s14, 1
      %s20 = ssub.s32 %s14, 2
      %s27 = sadd.s32 1, %s22
      %p28 = scmp.ge.s32.totalorder %s27, 1
      %s29 = scalar_select %p28, 0, %s27
      %s30 = sadd.s32 1, %s21
      %s31 = scalar_select %p28, %s30, %s21
      %p32 = scmp.ge.s32.totalorder %s31, 2
      %s33 = scalar_select %p32, 0, %s31
      %s35 = sadd.s32 %s34, 1
      %p38 = scmp.eq.s32.totalorder %s14, 1
      %p39 = scmp.ne.s32.totalorder %s34, %s36
      %p40 = scmp.eq.s32.totalorder %s14, 0
      %p41 = por %p39, %p40
      %p42 = scmp.ne.s32.totalorder %s34, %s36
      %p43 = scmp.eq.s32.totalorder %s19, 1
      %p44 = por %p42, %p43
      %p45 = scmp.ne.s32.totalorder %s36, %s37
      %p46 = scmp.eq.s32.totalorder %s19, 0
      %p47 = por %p45, %p46
      %p48 = scmp.ne.s32.totalorder %s36, %s37
      %p49 = scmp.eq.s32.totalorder %s20, 1
      %p50 = por %p48, %p49
      %p52 = scmp.ne.s32.totalorder %s37, %s51
      %p53 = scmp.eq.s32.totalorder %s20, 0
      %p54 = por %p52, %p53
      %s55 = ssub.s32 %s21, %s33
      %s56 = ssub.s32 %s22, %s29
      %s57 = sor.u32 %s55, %s56
      %p58 = scmp.eq.s32.totalorder %s57, 0
      %s60 = sadd.s32 %s59, 1
      %s61 = scalar_select %p58, %s59, %s60
      %p64 = pneg %p58
      %p65 = scmp.eq.s32.totalorder %s14, 1
      %p66 = por %p64, %p65
      %p67 = scmp.ne.s32.totalorder %s59, %s62
      %p68 = scmp.eq.s32.totalorder %s14, 0
      %p69 = por %p67, %p68
      %p70 = scmp.ne.s32.totalorder %s59, %s62
      %p71 = scmp.eq.s32.totalorder %s19, 1
      %p72 = por %p70, %p71
      %p73 = scmp.ne.s32.totalorder %s62, %s63
      %p74 = scmp.eq.s32.totalorder %s19, 0
      %p75 = por %p73, %p74
      %p76 = scmp.ne.s32.totalorder %s62, %s63
      %p77 = scmp.eq.s32.totalorder %s20, 1
      %p78 = por %p76, %p77
      %p80 = scmp.ne.s32.totalorder %s63, %s79
      %p81 = scmp.eq.s32.totalorder %s20, 0
      %p82 = por %p80, %p81
      %s84 = sadd.s32 %s83, 1
      %p87 = scmp.eq.s32.totalorder %s14, 1
      %p88 = scmp.ne.s32.totalorder %s83, %s85
      %p89 = scmp.eq.s32.totalorder %s14, 0
      %p90 = por %p88, %p89
      %p91 = scmp.ne.s32.totalorder %s83, %s85
      %p92 = scmp.eq.s32.totalorder %s19, 1
      %p93 = por %p91, %p92
      %p94 = scmp.ne.s32.totalorder %s85, %s86
      %p95 = scmp.eq.s32.totalorder %s19, 0
      %p96 = por %p94, %p95
      %p97 = scmp.ne.s32.totalorder %s85, %s86
      %p98 = scmp.eq.s32.totalorder %s20, 1
      %p99 = por %p97, %p98
      %p101 = scmp.ne.s32.totalorder %s86, %s100
      %p102 = scmp.eq.s32.totalorder %s20, 0
      %p103 = por %p101, %p102
      %s105 = sadd.s32 %s104, 1
      %p108 = scmp.eq.s32.totalorder %s14, 1
      %p109 = scmp.ne.s32.totalorder %s104, %s106
      %p110 = scmp.eq.s32.totalorder %s14, 0
      %p111 = por %p109, %p110
      %p112 = scmp.ne.s32.totalorder %s104, %s106
      %p113 = scmp.eq.s32.totalorder %s19, 1
      %p114 = por %p112, %p113
      %p115 = scmp.ne.s32.totalorder %s106, %s107
      %p116 = scmp.eq.s32.totalorder %s19, 0
      %p117 = por %p115, %p116
      %p118 = scmp.ne.s32.totalorder %s106, %s107
      %p119 = scmp.eq.s32.totalorder %s20, 1
      %p120 = por %p118, %p119
      %p122 = scmp.ne.s32.totalorder %s107, %s121
      %p123 = scmp.eq.s32.totalorder %s20, 0
      %p124 = por %p122, %p123
      %s125 = ssub.s32 %s21, %s33
      %p126 = scmp.eq.s32.totalorder %s125, 0
      %s128 = sadd.s32 %s127, 1
      %s129 = scalar_select %p126, %s127, %s128
      %p132 = pneg %p126
      %p133 = scmp.eq.s32.totalorder %s14, 1
      %p134 = por %p132, %p133
      %p135 = scmp.ne.s32.totalorder %s127, %s130
      %p136 = scmp.eq.s32.totalorder %s14, 0
      %p137 = por %p135, %p136
      %p138 = scmp.ne.s32.totalorder %s127, %s130
      %p139 = scmp.eq.s32.totalorder %s19, 1
      %p140 = por %p138, %p139
      %p141 = scmp.ne.s32.totalorder %s130, %s131
      %p142 = scmp.eq.s32.totalorder %s19, 0
      %p143 = por %p141, %p142
      %p144 = scmp.ne.s32.totalorder %s130, %s131
      %p145 = scmp.eq.s32.totalorder %s20, 1
      %p146 = por %p144, %p145
      %p148 = scmp.ne.s32.totalorder %s131, %s147
      %p149 = scmp.eq.s32.totalorder %s20, 0
      %p150 = por %p148, %p149
      %p151 = scmp.le.s32.totalorder 1, %s14
      %p152 = scmp.lt.s32.totalorder %s14, 3
      %p153 = pnand %p151, %p152
      %p154 = pneg %p153
      // Predicated region
      $region9: #{tpu_custom_call.1} parent=5 // pred_check
        _
      $region10: #{tpu_custom_call.1} parent=5 // pred_check_branch
        %156 = sbr.rel (%p153) target = $region12
      $region11: #{tpu_custom_call.1} parent=5 // pred_region
        %s157 = ssub.s32 %s14, 1
        // Predicated region
        $region13: #{tpu_custom_call.1} parent=11 // pred_check
          %p158 = pneg %p47
        $region14: #{tpu_custom_call.1} parent=11 // pred_check_branch
          %160 = sbr.rel (%p158) target = $region16
        $region15: #{tpu_custom_call.1} parent=11 // pred_region
          %s162 = ssub.s32 16, 16
          %163 = vsyncadd [#allocation6], %s162
          %s165 = sshll.u32 %s0, 4
          %s166 = int_to_ptr.vmem [resolvable:$true] %s165
          %168 = dma.vmem_to_smem %s166, 16, [#allocation4], [#allocation6]
        $region16: #{tpu_custom_call.1} parent=11 // pred_fallthru
          _
        // Predicated region
        $region17: #{tpu_custom_call.1} parent=11 // pred_check
          %p169 = pneg %p96
        $region18: #{tpu_custom_call.1} parent=11 // pred_check_branch
          %171 = sbr.rel (%p169) target = $region20
        $region19: #{tpu_custom_call.1} parent=11 // pred_region
          _
        $region20: #{tpu_custom_call.1} parent=11 // pred_fallthru
          _
        // Predicated region
        $region21: #{tpu_custom_call.1} parent=11 // pred_check
          %p172 = pneg %p117
        $region22: #{tpu_custom_call.1} parent=11 // pred_check_branch
          %174 = sbr.rel (%p172) target = $region24
        $region23: #{tpu_custom_call.1} parent=11 // pred_region
          _
        $region24: #{tpu_custom_call.1} parent=11 // pred_fallthru
          _
      $region12: #{tpu_custom_call.1} parent=5 // pred_fallthru
        _
      %p175 = scmp.lt.s32.totalorder %s14, 2
      // Predicated region
      $region25: #{tpu_custom_call.1} parent=5 // pred_check
        %p176 = pneg %p175
      $region26: #{tpu_custom_call.1} parent=5 // pred_check_branch
        %178 = sbr.rel (%p176) target = $region28
      $region27: #{tpu_custom_call.1} parent=5 // pred_region
        // Predicated region
        $region29: #{tpu_custom_call.1} parent=27 // pred_check
          %p179 = pneg %p69
        $region30: #{tpu_custom_call.1} parent=27 // pred_check_branch
          %181 = sbr.rel (%p179) target = $region32
        $region31: #{tpu_custom_call.1} parent=27 // pred_region
          %p182 = scmp.lt.s32.totalorder %s21, 1
          %s183 = scalar_select %p182, %s21, 1
          %p184 = scmp.lt.s32.totalorder %s22, 0
          %s185 = scalar_select %p184, %s22, 0
          %s186 = smul.addr %s183, 4
          %s187 = sadd.s32 %s185, %s186
          %s188 = smul.addr %s187, 8
          %s189 = scalar_lea.vmem %s1, %s188
        $region32: #{tpu_custom_call.1} parent=27 // pred_fallthru
          _
      $region28: #{tpu_custom_call.1} parent=5 // pred_fallthru
        _
      %p190 = scmp.le.s32.totalorder 1, %s14
      %p191 = scmp.lt.s32.totalorder %s14, 3
      %p192 = pnand %p190, %p191
      %p193 = pneg %p192
      // Predicated region
      $region33: #{tpu_custom_call.1} parent=5 // pred_check
        _
      $region34: #{tpu_custom_call.1} parent=5 // pred_check_branch
        %195 = sbr.rel (%p192) target = $region36
      $region35: #{tpu_custom_call.1} parent=5 // pred_region
        %s196 = ssub.s32 %s14, 1
        // Predicated region
        $region37: #{tpu_custom_call.1} parent=35 // pred_check
          %p197 = pneg %p47
        $region38: #{tpu_custom_call.1} parent=35 // pred_check_branch
          %199 = sbr.rel (%p197) target = $region40
        $region39: #{tpu_custom_call.1} parent=35 // pred_region
          %200 = dma.done [#allocation6], 16
        $region40: #{tpu_custom_call.1} parent=35 // pred_fallthru
          _
        %201 = sfence
        %p202 = pneg %p47
        %p203 = pneg %p44
        %p204 = scmp.lt.s32.totalorder %s23, 1
        %s205 = scalar_select %p204, %s23, 1
        %p206 = scmp.lt.s32.totalorder %s24, 0
        %s207 = scalar_select %p206, %s24, 0
        %s208 = smul.addr %s205, 4
        %s209 = sadd.s32 %s207, %s208
        %s210 = smul.addr %s209, 8
        %s211 = scalar_lea.vmem %s1, %s210
        %p212 = pneg %p75
        %p213 = pneg %p72
        %p214 = pneg %p96
        %p215 = pneg %p93
        %p216 = pneg %p117
        %p217 = pneg %p114
        %p218 = pneg %p143
        %p219 = pneg %p140
        %s220 = sand.u32 %s130, 1
        %s221 = scalar_lea.sflag [#allocation5], %s220
        %s222 = sand.u32 %s130, 1
        %s223 = scalar_lea.vmem [#allocation7], %s222
        %p224 = scmp.lt.s32.totalorder %s23, 1
        %s225 = scalar_select %p224, %s23, 1
        %p226 = scmp.lt.s32.totalorder %s24, 0
        %s227 = scalar_select %p226, %s24, 0
        %s228 = smul.addr %s225, 4
        %s229 = sadd.s32 %s227, %s228
        %s230 = smul.addr %s229, 8
        %s231 = scalar_lea.vmem %s1, %s230
        %p232 = scmp.eq.s32.totalorder %s24, 0
        // Predicated region
        $region41: #{tpu_custom_call.1} parent=35 // pred_check
          %p233 = pneg %p232
        $region42: #{tpu_custom_call.1} parent=35 // pred_check_branch
          %235 = sbr.rel (%p233) target = $region44
        $region43: #{tpu_custom_call.1} parent=35 // pred_region
          %vm236 = vcmask 253952
          %237 = vst.msk [vmem:[#allocation2] sm:$0x1] %vm236, 0.0
          %238 = vst.msk [vmem:[#allocation3] sm:$0x1] %vm236, -inf
        $region44: #{tpu_custom_call.1} parent=35 // pred_fallthru
          _
        %v239 = vld [vmem:[%s231] sm:$0xff]
        %v240 = vld [vmem:[%s231 + $0x8] sm:$0xff]
        %v241 = vld [vmem:[%s231 + $0x10] sm:$0xff]
        %v242 = vld [vmem:[%s231 + $0x18] sm:$0xff]
        %v243 = vld [vmem:[#allocation2] sm:$0x1]
        %vm244 = vcmask 130048
        %v245 = vsel %vm244, %v239, 0.0
        %246 = vadd.xlane.f32.xlu0 %v245
        %v247 = vpop.xlane.xlu0 %246
        %v248 = vsel %vm244, %v240, 0.0
        %249 = vadd.xlane.f32.xlu0 %v248
        %v250 = vpop.xlane.xlu0 %249
        %v251 = vsel %vm244, %v241, 0.0
        %252 = vadd.xlane.f32.xlu0 %v251
        %v253 = vpop.xlane.xlu0 %252
        %v254 = vsel %vm244, %v242, 0.0
        %255 = vadd.xlane.f32.xlu0 %v254
        %v256 = vpop.xlane.xlu0 %255
        %v261 = vlaneseq
        %v262 = vshrl.u32 %v261, 7
        %v263 = vsub.s32 0, %v262
        %v264 = vrot.slane %v247, %v263
        %v265 = vlaneseq
        %v266 = vshrl.u32 %v265, 7
        %v267 = vsub.s32 1, %v266
        %v268 = vrot.slane %v247, %v267
        %v269 = vlaneseq
        %v270 = vshrl.u32 %v269, 7
        %v271 = vsub.s32 2, %v270
        %v272 = vrot.slane %v247, %v271
        %v273 = vlaneseq
        %v274 = vshrl.u32 %v273, 7
        %v275 = vsub.s32 3, %v274
        %v276 = vrot.slane %v247, %v275
        %v277 = vlaneseq
        %v278 = vshrl.u32 %v277, 7
        %v279 = vsub.s32 4, %v278
        %v280 = vrot.slane %v247, %v279
        %v281 = vlaneseq
        %v282 = vshrl.u32 %v281, 7
        %v283 = vsub.s32 5, %v282
        %v284 = vrot.slane %v247, %v283
        %v285 = vlaneseq
        %v286 = vshrl.u32 %v285, 7
        %v287 = vsub.s32 6, %v286
        %v288 = vrot.slane %v247, %v287
        %v289 = vlaneseq
        %v290 = vshrl.u32 %v289, 7
        %v291 = vsub.s32 7, %v290
        %v292 = vrot.slane %v247, %v291
        %v293 = vlaneseq
        %v294 = vshrl.u32 %v293, 7
        %v295 = vsub.s32 0, %v294
        %v296 = vrot.slane %v250, %v295
        %v297 = vlaneseq
        %v298 = vshrl.u32 %v297, 7
        %v299 = vsub.s32 1, %v298
        %v300 = vrot.slane %v250, %v299
        %v301 = vlaneseq
        %v302 = vshrl.u32 %v301, 7
        %v303 = vsub.s32 2, %v302
        %v304 = vrot.slane %v250, %v303
        %v305 = vlaneseq
        %v306 = vshrl.u32 %v305, 7
        %v307 = vsub.s32 3, %v306
        %v308 = vrot.slane %v250, %v307
        %v309 = vlaneseq
        %v310 = vshrl.u32 %v309, 7
        %v311 = vsub.s32 4, %v310
        %v312 = vrot.slane %v250, %v311
        %v313 = vlaneseq
        %v314 = vshrl.u32 %v313, 7
        %v315 = vsub.s32 5, %v314
        %v316 = vrot.slane %v250, %v315
        %v317 = vlaneseq
        %v318 = vshrl.u32 %v317, 7
        %v319 = vsub.s32 6, %v318
        %v320 = vrot.slane %v250, %v319
        %v321 = vlaneseq
        %v322 = vshrl.u32 %v321, 7
        %v323 = vsub.s32 7, %v322
        %v324 = vrot.slane %v250, %v323
        %v325 = vlaneseq
        %v326 = vshrl.u32 %v325, 7
        %v327 = vsub.s32 0, %v326
        %v328 = vrot.slane %v253, %v327
        %v329 = vlaneseq
        %v330 = vshrl.u32 %v329, 7
        %v331 = vsub.s32 1, %v330
        %v332 = vrot.slane %v253, %v331
        %v333 = vlaneseq
        %v334 = vshrl.u32 %v333, 7
        %v335 = vsub.s32 2, %v334
        %v336 = vrot.slane %v253, %v335
        %v337 = vlaneseq
        %v338 = vshrl.u32 %v337, 7
        %v339 = vsub.s32 3, %v338
        %v340 = vrot.slane %v253, %v339
        %v341 = vlaneseq
        %v342 = vshrl.u32 %v341, 7
        %v343 = vsub.s32 4, %v342
        %v344 = vrot.slane %v253, %v343
        %v345 = vlaneseq
        %v346 = vshrl.u32 %v345, 7
        %v347 = vsub.s32 5, %v346
        %v348 = vrot.slane %v253, %v347
        %v349 = vlaneseq
        %v350 = vshrl.u32 %v349, 7
        %v351 = vsub.s32 6, %v350
        %v352 = vrot.slane %v253, %v351
        %v353 = vlaneseq
        %v354 = vshrl.u32 %v353, 7
        %v355 = vsub.s32 7, %v354
        %v356 = vrot.slane %v253, %v355
        %v357 = vlaneseq
        %v358 = vshrl.u32 %v357, 7
        %v359 = vsub.s32 0, %v358
        %v360 = vrot.slane %v256, %v359
        %v361 = vlaneseq
        %v362 = vshrl.u32 %v361, 7
        %v363 = vsub.s32 1, %v362
        %v364 = vrot.slane %v256, %v363
        %v365 = vlaneseq
        %v366 = vshrl.u32 %v365, 7
        %v367 = vsub.s32 2, %v366
        %v368 = vrot.slane %v256, %v367
        %v369 = vlaneseq
        %v370 = vshrl.u32 %v369, 7
        %v371 = vsub.s32 3, %v370
        %v372 = vrot.slane %v256, %v371
        %v373 = vlaneseq
        %v374 = vshrl.u32 %v373, 7
        %v375 = vsub.s32 4, %v374
        %v376 = vrot.slane %v256, %v375
        %v377 = vlaneseq
        %v378 = vshrl.u32 %v377, 7
        %v379 = vsub.s32 5, %v378
        %v380 = vrot.slane %v256, %v379
        %v381 = vlaneseq
        %v382 = vshrl.u32 %v381, 7
        %v383 = vsub.s32 6, %v382
        %v384 = vrot.slane %v256, %v383
        %v385 = vlaneseq
        %v386 = vshrl.u32 %v385, 7
        %v387 = vsub.s32 7, %v386
        %v388 = vrot.slane %v256, %v387
        %v389 = vcombine.low %v264, %v268
        %v390 = vcombine.low %v272, %v276
        %v391 = vcombine.low %v280, %v284
        %v392 = vcombine.low %v288, %v292
        %v394 = vunpack.c.l.s4 1966171168
        %v395 = vunpack.c.0.s8 %v394
        %v396 = vlaneseq
        %v397 = vshrl.u32 %v396, 7
        %v398 = vsub.s32 %v395, %v397
        %v399 = vrot.slane %v389, %v398
        %v401 = vunpack.c.l.s4 1966171168
        %v402 = vunpack.c.0.s8 %v401
        %v403 = vlaneseq
        %v404 = vshrl.u32 %v403, 7
        %v405 = vsub.s32 %v402, %v404
        %v406 = vrot.slane %v390, %v405
        %v408 = vunpack.c.l.s4 1966171168
        %v409 = vunpack.c.0.s8 %v408
        %v410 = vlaneseq
        %v411 = vshrl.u32 %v410, 7
        %v412 = vsub.s32 %v409, %v411
        %v413 = vrot.slane %v391, %v412
        %v415 = vunpack.c.l.s4 1966171168
        %v416 = vunpack.c.0.s8 %v415
        %v417 = vlaneseq
        %v418 = vshrl.u32 %v417, 7
        %v419 = vsub.s32 %v416, %v418
        %v420 = vrot.slane %v392, %v419
        %v421 = vcombine.low %v399, %v406
        %v422 = vcombine.low %v413, %v420
        %v424 = vunpack.c.l.s4 1966171168
        %v425 = vunpack.c.0.s8 %v424
        %v426 = vlaneseq
        %v427 = vshrl.u32 %v426, 7
        %v428 = vsub.s32 %v425, %v427
        %v429 = vrot.slane %v421, %v428
        %v431 = vunpack.c.l.s4 1966171168
        %v432 = vunpack.c.0.s8 %v431
        %v433 = vlaneseq
        %v434 = vshrl.u32 %v433, 7
        %v435 = vsub.s32 %v432, %v434
        %v436 = vrot.slane %v422, %v435
        %v437 = vcombine.low %v429, %v436
        %v438 = vcombine.low %v296, %v300
        %v439 = vcombine.low %v304, %v308
        %v440 = vcombine.low %v312, %v316
        %v441 = vcombine.low %v320, %v324
        %v443 = vunpack.c.l.s4 1966171168
        %v444 = vunpack.c.0.s8 %v443
        %v445 = vlaneseq
        %v446 = vshrl.u32 %v445, 7
        %v447 = vsub.s32 %v444, %v446
        %v448 = vrot.slane %v438, %v447
        %v450 = vunpack.c.l.s4 1966171168
        %v451 = vunpack.c.0.s8 %v450
        %v452 = vlaneseq
        %v453 = vshrl.u32 %v452, 7
        %v454 = vsub.s32 %v451, %v453
        %v455 = vrot.slane %v439, %v454
        %v457 = vunpack.c.l.s4 1966171168
        %v458 = vunpack.c.0.s8 %v457
        %v459 = vlaneseq
        %v460 = vshrl.u32 %v459, 7
        %v461 = vsub.s32 %v458, %v460
        %v462 = vrot.slane %v440, %v461
        %v464 = vunpack.c.l.s4 1966171168
        %v465 = vunpack.c.0.s8 %v464
        %v466 = vlaneseq
        %v467 = vshrl.u32 %v466, 7
        %v468 = vsub.s32 %v465, %v467
        %v469 = vrot.slane %v441, %v468
        %v470 = vcombine.low %v448, %v455
        %v471 = vcombine.low %v462, %v469
        %v473 = vunpack.c.l.s4 1966171168
        %v474 = vunpack.c.0.s8 %v473
        %v475 = vlaneseq
        %v476 = vshrl.u32 %v475, 7
        %v477 = vsub.s32 %v474, %v476
        %v478 = vrot.slane %v470, %v477
        %v480 = vunpack.c.l.s4 1966171168
        %v481 = vunpack.c.0.s8 %v480
        %v482 = vlaneseq
        %v483 = vshrl.u32 %v482, 7
        %v484 = vsub.s32 %v481, %v483
        %v485 = vrot.slane %v471, %v484
        %v486 = vcombine.low %v478, %v485
        %v487 = vcombine.low %v328, %v332
        %v488 = vcombine.low %v336, %v340
        %v489 = vcombine.low %v344, %v348
        %v490 = vcombine.low %v352, %v356
        %v492 = vunpack.c.l.s4 1966171168
        %v493 = vunpack.c.0.s8 %v492
        %v494 = vlaneseq
        %v495 = vshrl.u32 %v494, 7
        %v496 = vsub.s32 %v493, %v495
        %v497 = vrot.slane %v487, %v496
        %v499 = vunpack.c.l.s4 1966171168
        %v500 = vunpack.c.0.s8 %v499
        %v501 = vlaneseq
        %v502 = vshrl.u32 %v501, 7
        %v503 = vsub.s32 %v500, %v502
        %v504 = vrot.slane %v488, %v503
        %v506 = vunpack.c.l.s4 1966171168
        %v507 = vunpack.c.0.s8 %v506
        %v508 = vlaneseq
        %v509 = vshrl.u32 %v508, 7
        %v510 = vsub.s32 %v507, %v509
        %v511 = vrot.slane %v489, %v510
        %v513 = vunpack.c.l.s4 1966171168
        %v514 = vunpack.c.0.s8 %v513
        %v515 = vlaneseq
        %v516 = vshrl.u32 %v515, 7
        %v517 = vsub.s32 %v514, %v516
        %v518 = vrot.slane %v490, %v517
        %v519 = vcombine.low %v497, %v504
        %v520 = vcombine.low %v511, %v518
        %v522 = vunpack.c.l.s4 1966171168
        %v523 = vunpack.c.0.s8 %v522
        %v524 = vlaneseq
        %v525 = vshrl.u32 %v524, 7
        %v526 = vsub.s32 %v523, %v525
        %v527 = vrot.slane %v519, %v526
        %v529 = vunpack.c.l.s4 1966171168
        %v530 = vunpack.c.0.s8 %v529
        %v531 = vlaneseq
        %v532 = vshrl.u32 %v531, 7
        %v533 = vsub.s32 %v530, %v532
        %v534 = vrot.slane %v520, %v533
        %v535 = vcombine.low %v527, %v534
        %v536 = vcombine.low %v360, %v364
        %v537 = vcombine.low %v368, %v372
        %v538 = vcombine.low %v376, %v380
        %v539 = vcombine.low %v384, %v388
        %v541 = vunpack.c.l.s4 1966171168
        %v542 = vunpack.c.0.s8 %v541
        %v543 = vlaneseq
        %v544 = vshrl.u32 %v543, 7
        %v545 = vsub.s32 %v542, %v544
        %v546 = vrot.slane %v536, %v545
        %v548 = vunpack.c.l.s4 1966171168
        %v549 = vunpack.c.0.s8 %v548
        %v550 = vlaneseq
        %v551 = vshrl.u32 %v550, 7
        %v552 = vsub.s32 %v549, %v551
        %v553 = vrot.slane %v537, %v552
        %v555 = vunpack.c.l.s4 1966171168
        %v556 = vunpack.c.0.s8 %v555
        %v557 = vlaneseq
        %v558 = vshrl.u32 %v557, 7
        %v559 = vsub.s32 %v556, %v558
        %v560 = vrot.slane %v538, %v559
        %v562 = vunpack.c.l.s4 1966171168
        %v563 = vunpack.c.0.s8 %v562
        %v564 = vlaneseq
        %v565 = vshrl.u32 %v564, 7
        %v566 = vsub.s32 %v563, %v565
        %v567 = vrot.slane %v539, %v566
        %v568 = vcombine.low %v546, %v553
        %v569 = vcombine.low %v560, %v567
        %v571 = vunpack.c.l.s4 1966171168
        %v572 = vunpack.c.0.s8 %v571
        %v573 = vlaneseq
        %v574 = vshrl.u32 %v573, 7
        %v575 = vsub.s32 %v572, %v574
        %v576 = vrot.slane %v568, %v575
        %v578 = vunpack.c.l.s4 1966171168
        %v579 = vunpack.c.0.s8 %v578
        %v580 = vlaneseq
        %v581 = vshrl.u32 %v580, 7
        %v582 = vsub.s32 %v579, %v581
        %v583 = vrot.slane %v569, %v582
        %v584 = vcombine.low %v576, %v583
        %585 = vset.pattern.permute.xlu0 0
        %586 = vperm.xlu0 %585, %v437
        %v587 = vpop.permute.xlu0 %586
        %588 = vset.pattern.permute.xlu0 0
        %589 = vperm.xlu0 %588, %v486
        %v590 = vpop.permute.xlu0 %589
        %591 = vset.pattern.permute.xlu0 0
        %592 = vperm.xlu0 %591, %v535
        %v593 = vpop.permute.xlu0 %592
        %594 = vset.pattern.permute.xlu0 0
        %595 = vperm.xlu0 %594, %v584
        %v596 = vpop.permute.xlu0 %595
        %v597 = vlaneseq
        %v598 = vand.u32 %v597, 127
        %v599 = vlaneseq
        %v600 = vshrl.u32 %v599, 7
        %v601 = vsub.s32 %v598, %v600
        %v602 = vrot.slane %v587, %v601
        %v603 = vadd.s32 %v598, 4294967288
        %v604 = vlaneseq
        %v605 = vshrl.u32 %v604, 7
        %v606 = vsub.s32 %v603, %v605
        %v607 = vrot.slane %v590, %v606
        %vm608 = vcmask 130112
        %v609 = vsel %vm608, %v607, %v602
        %v610 = vadd.s32 %v598, 4294967280
        %v611 = vlaneseq
        %v612 = vshrl.u32 %v611, 7
        %v613 = vsub.s32 %v610, %v612
        %v614 = vrot.slane %v593, %v613
        %vm615 = vcmask 195712
        %v616 = vsel %vm615, %v614, %v609
        %v617 = vadd.s32 %v598, 4294967272
        %v618 = vlaneseq
        %v619 = vshrl.u32 %v618, 7
        %v620 = vsub.s32 %v617, %v619
        %v621 = vrot.slane %v596, %v620
        %vm622 = vcmask 261312
        %v623 = vsel %vm622, %v621, %v616
        %v625 = vunpack.c.l.s4 1966171168
        %v626 = vunpack.c.0.s8 %v625
        %v627 = vlaneseq
        %v628 = vshrl.u32 %v627, 7
        %v629 = vsub.s32 %v626, %v628
        %v630 = vrot.slane %v623, %v629
        %v632 = vunpack.c.l.s4 1966171168
        %v633 = vunpack.c.0.s8 %v632
        %v634 = vlaneseq
        %v635 = vshrl.u32 %v634, 7
        %v636 = vsub.s32 %v633, %v635
        %v637 = vrot.slane %v630, %v636
        %v639 = vadd.f32 %v243, %v637
        %vm640 = vcmask 253952
        %641 = vst.msk [vmem:[#allocation2] sm:$0x1] %vm640, %v639
        %v642 = vld [vmem:[#allocation3] sm:$0x1]
        %v643 = vsel %vm244, %v239, -inf
        %644 = vmax.xlane.f32.xlu0 %v643
        %v645 = vpop.xlane.xlu0 %644
        %v646 = vsel %vm244, %v240, -inf
        %647 = vmax.xlane.f32.xlu0 %v646
        %v648 = vpop.xlane.xlu0 %647
        %v649 = vsel %vm244, %v241, -inf
        %650 = vmax.xlane.f32.xlu0 %v649
        %v651 = vpop.xlane.xlu0 %650
        %v652 = vsel %vm244, %v242, -inf
        %653 = vmax.xlane.f32.xlu0 %v652
        %v654 = vpop.xlane.xlu0 %653
        %v659 = vlaneseq
        %v660 = vshrl.u32 %v659, 7
        %v661 = vsub.s32 0, %v660
        %v662 = vrot.slane %v645, %v661
        %v663 = vlaneseq
        %v664 = vshrl.u32 %v663, 7
        %v665 = vsub.s32 1, %v664
        %v666 = vrot.slane %v645, %v665
        %v667 = vlaneseq
        %v668 = vshrl.u32 %v667, 7
        %v669 = vsub.s32 2, %v668
        %v670 = vrot.slane %v645, %v669
        %v671 = vlaneseq
        %v672 = vshrl.u32 %v671, 7
        %v673 = vsub.s32 3, %v672
        %v674 = vrot.slane %v645, %v673
        %v675 = vlaneseq
        %v676 = vshrl.u32 %v675, 7
        %v677 = vsub.s32 4, %v676
        %v678 = vrot.slane %v645, %v677
        %v679 = vlaneseq
        %v680 = vshrl.u32 %v679, 7
        %v681 = vsub.s32 5, %v680
        %v682 = vrot.slane %v645, %v681
        %v683 = vlaneseq
        %v684 = vshrl.u32 %v683, 7
        %v685 = vsub.s32 6, %v684
        %v686 = vrot.slane %v645, %v685
        %v687 = vlaneseq
        %v688 = vshrl.u32 %v687, 7
        %v689 = vsub.s32 7, %v688
        %v690 = vrot.slane %v645, %v689
        %v691 = vlaneseq
        %v692 = vshrl.u32 %v691, 7
        %v693 = vsub.s32 0, %v692
        %v694 = vrot.slane %v648, %v693
        %v695 = vlaneseq
        %v696 = vshrl.u32 %v695, 7
        %v697 = vsub.s32 1, %v696
        %v698 = vrot.slane %v648, %v697
        %v699 = vlaneseq
        %v700 = vshrl.u32 %v699, 7
        %v701 = vsub.s32 2, %v700
        %v702 = vrot.slane %v648, %v701
        %v703 = vlaneseq
        %v704 = vshrl.u32 %v703, 7
        %v705 = vsub.s32 3, %v704
        %v706 = vrot.slane %v648, %v705
        %v707 = vlaneseq
        %v708 = vshrl.u32 %v707, 7
        %v709 = vsub.s32 4, %v708
        %v710 = vrot.slane %v648, %v709
        %v711 = vlaneseq
        %v712 = vshrl.u32 %v711, 7
        %v713 = vsub.s32 5, %v712
        %v714 = vrot.slane %v648, %v713
        %v715 = vlaneseq
        %v716 = vshrl.u32 %v715, 7
        %v717 = vsub.s32 6, %v716
        %v718 = vrot.slane %v648, %v717
        %v719 = vlaneseq
        %v720 = vshrl.u32 %v719, 7
        %v721 = vsub.s32 7, %v720
        %v722 = vrot.slane %v648, %v721
        %v723 = vlaneseq
        %v724 = vshrl.u32 %v723, 7
        %v725 = vsub.s32 0, %v724
        %v726 = vrot.slane %v651, %v725
        %v727 = vlaneseq
        %v728 = vshrl.u32 %v727, 7
        %v729 = vsub.s32 1, %v728
        %v730 = vrot.slane %v651, %v729
        %v731 = vlaneseq
        %v732 = vshrl.u32 %v731, 7
        %v733 = vsub.s32 2, %v732
        %v734 = vrot.slane %v651, %v733
        %v735 = vlaneseq
        %v736 = vshrl.u32 %v735, 7
        %v737 = vsub.s32 3, %v736
        %v738 = vrot.slane %v651, %v737
        %v739 = vlaneseq
        %v740 = vshrl.u32 %v739, 7
        %v741 = vsub.s32 4, %v740
        %v742 = vrot.slane %v651, %v741
        %v743 = vlaneseq
        %v744 = vshrl.u32 %v743, 7
        %v745 = vsub.s32 5, %v744
        %v746 = vrot.slane %v651, %v745
        %v747 = vlaneseq
        %v748 = vshrl.u32 %v747, 7
        %v749 = vsub.s32 6, %v748
        %v750 = vrot.slane %v651, %v749
        %v751 = vlaneseq
        %v752 = vshrl.u32 %v751, 7
        %v753 = vsub.s32 7, %v752
        %v754 = vrot.slane %v651, %v753
        %v755 = vlaneseq
        %v756 = vshrl.u32 %v755, 7
        %v757 = vsub.s32 0, %v756
        %v758 = vrot.slane %v654, %v757
        %v759 = vlaneseq
        %v760 = vshrl.u32 %v759, 7
        %v761 = vsub.s32 1, %v760
        %v762 = vrot.slane %v654, %v761
        %v763 = vlaneseq
        %v764 = vshrl.u32 %v763, 7
        %v765 = vsub.s32 2, %v764
        %v766 = vrot.slane %v654, %v765
        %v767 = vlaneseq
        %v768 = vshrl.u32 %v767, 7
        %v769 = vsub.s32 3, %v768
        %v770 = vrot.slane %v654, %v769
        %v771 = vlaneseq
        %v772 = vshrl.u32 %v771, 7
        %v773 = vsub.s32 4, %v772
        %v774 = vrot.slane %v654, %v773
        %v775 = vlaneseq
        %v776 = vshrl.u32 %v775, 7
        %v777 = vsub.s32 5, %v776
        %v778 = vrot.slane %v654, %v777
        %v779 = vlaneseq
        %v780 = vshrl.u32 %v779, 7
        %v781 = vsub.s32 6, %v780
        %v782 = vrot.slane %v654, %v781
        %v783 = vlaneseq
        %v784 = vshrl.u32 %v783, 7
        %v785 = vsub.s32 7, %v784
        %v786 = vrot.slane %v654, %v785
        %v787 = vcombine.low %v662, %v666
        %v788 = vcombine.low %v670, %v674
        %v789 = vcombine.low %v678, %v682
        %v790 = vcombine.low %v686, %v690
        %v792 = vunpack.c.l.s4 1966171168
        %v793 = vunpack.c.0.s8 %v792
        %v794 = vlaneseq
        %v795 = vshrl.u32 %v794, 7
        %v796 = vsub.s32 %v793, %v795
        %v797 = vrot.slane %v787, %v796
        %v799 = vunpack.c.l.s4 1966171168
        %v800 = vunpack.c.0.s8 %v799
        %v801 = vlaneseq
        %v802 = vshrl.u32 %v801, 7
        %v803 = vsub.s32 %v800, %v802
        %v804 = vrot.slane %v788, %v803
        %v806 = vunpack.c.l.s4 1966171168
        %v807 = vunpack.c.0.s8 %v806
        %v808 = vlaneseq
        %v809 = vshrl.u32 %v808, 7
        %v810 = vsub.s32 %v807, %v809
        %v811 = vrot.slane %v789, %v810
        %v813 = vunpack.c.l.s4 1966171168
        %v814 = vunpack.c.0.s8 %v813
        %v815 = vlaneseq
        %v816 = vshrl.u32 %v815, 7
        %v817 = vsub.s32 %v814, %v816
        %v818 = vrot.slane %v790, %v817
        %v819 = vcombine.low %v797, %v804
        %v820 = vcombine.low %v811, %v818
        %v822 = vunpack.c.l.s4 1966171168
        %v823 = vunpack.c.0.s8 %v822
        %v824 = vlaneseq
        %v825 = vshrl.u32 %v824, 7
        %v826 = vsub.s32 %v823, %v825
        %v827 = vrot.slane %v819, %v826
        %v829 = vunpack.c.l.s4 1966171168
        %v830 = vunpack.c.0.s8 %v829
        %v831 = vlaneseq
        %v832 = vshrl.u32 %v831, 7
        %v833 = vsub.s32 %v830, %v832
        %v834 = vrot.slane %v820, %v833
        %v835 = vcombine.low %v827, %v834
        %v836 = vcombine.low %v694, %v698
        %v837 = vcombine.low %v702, %v706
        %v838 = vcombine.low %v710, %v714
        %v839 = vcombine.low %v718, %v722
        %v841 = vunpack.c.l.s4 1966171168
        %v842 = vunpack.c.0.s8 %v841
        %v843 = vlaneseq
        %v844 = vshrl.u32 %v843, 7
        %v845 = vsub.s32 %v842, %v844
        %v846 = vrot.slane %v836, %v845
        %v848 = vunpack.c.l.s4 1966171168
        %v849 = vunpack.c.0.s8 %v848
        %v850 = vlaneseq
        %v851 = vshrl.u32 %v850, 7
        %v852 = vsub.s32 %v849, %v851
        %v853 = vrot.slane %v837, %v852
        %v855 = vunpack.c.l.s4 1966171168
        %v856 = vunpack.c.0.s8 %v855
        %v857 = vlaneseq
        %v858 = vshrl.u32 %v857, 7
        %v859 = vsub.s32 %v856, %v858
        %v860 = vrot.slane %v838, %v859
        %v862 = vunpack.c.l.s4 1966171168
        %v863 = vunpack.c.0.s8 %v862
        %v864 = vlaneseq
        %v865 = vshrl.u32 %v864, 7
        %v866 = vsub.s32 %v863, %v865
        %v867 = vrot.slane %v839, %v866
        %v868 = vcombine.low %v846, %v853
        %v869 = vcombine.low %v860, %v867
        %v871 = vunpack.c.l.s4 1966171168
        %v872 = vunpack.c.0.s8 %v871
        %v873 = vlaneseq
        %v874 = vshrl.u32 %v873, 7
        %v875 = vsub.s32 %v872, %v874
        %v876 = vrot.slane %v868, %v875
        %v878 = vunpack.c.l.s4 1966171168
        %v879 = vunpack.c.0.s8 %v878
        %v880 = vlaneseq
        %v881 = vshrl.u32 %v880, 7
        %v882 = vsub.s32 %v879, %v881
        %v883 = vrot.slane %v869, %v882
        %v884 = vcombine.low %v876, %v883
        %v885 = vcombine.low %v726, %v730
        %v886 = vcombine.low %v734, %v738
        %v887 = vcombine.low %v742, %v746
        %v888 = vcombine.low %v750, %v754
        %v890 = vunpack.c.l.s4 1966171168
        %v891 = vunpack.c.0.s8 %v890
        %v892 = vlaneseq
        %v893 = vshrl.u32 %v892, 7
        %v894 = vsub.s32 %v891, %v893
        %v895 = vrot.slane %v885, %v894
        %v897 = vunpack.c.l.s4 1966171168
        %v898 = vunpack.c.0.s8 %v897
        %v899 = vlaneseq
        %v900 = vshrl.u32 %v899, 7
        %v901 = vsub.s32 %v898, %v900
        %v902 = vrot.slane %v886, %v901
        %v904 = vunpack.c.l.s4 1966171168
        %v905 = vunpack.c.0.s8 %v904
        %v906 = vlaneseq
        %v907 = vshrl.u32 %v906, 7
        %v908 = vsub.s32 %v905, %v907
        %v909 = vrot.slane %v887, %v908
        %v911 = vunpack.c.l.s4 1966171168
        %v912 = vunpack.c.0.s8 %v911
        %v913 = vlaneseq
        %v914 = vshrl.u32 %v913, 7
        %v915 = vsub.s32 %v912, %v914
        %v916 = vrot.slane %v888, %v915
        %v917 = vcombine.low %v895, %v902
        %v918 = vcombine.low %v909, %v916
        %v920 = vunpack.c.l.s4 1966171168
        %v921 = vunpack.c.0.s8 %v920
        %v922 = vlaneseq
        %v923 = vshrl.u32 %v922, 7
        %v924 = vsub.s32 %v921, %v923
        %v925 = vrot.slane %v917, %v924
        %v927 = vunpack.c.l.s4 1966171168
        %v928 = vunpack.c.0.s8 %v927
        %v929 = vlaneseq
        %v930 = vshrl.u32 %v929, 7
        %v931 = vsub.s32 %v928, %v930
        %v932 = vrot.slane %v918, %v931
        %v933 = vcombine.low %v925, %v932
        %v934 = vcombine.low %v758, %v762
        %v935 = vcombine.low %v766, %v770
        %v936 = vcombine.low %v774, %v778
        %v937 = vcombine.low %v782, %v786
        %v939 = vunpack.c.l.s4 1966171168
        %v940 = vunpack.c.0.s8 %v939
        %v941 = vlaneseq
        %v942 = vshrl.u32 %v941, 7
        %v943 = vsub.s32 %v940, %v942
        %v944 = vrot.slane %v934, %v943
        %v946 = vunpack.c.l.s4 1966171168
        %v947 = vunpack.c.0.s8 %v946
        %v948 = vlaneseq
        %v949 = vshrl.u32 %v948, 7
        %v950 = vsub.s32 %v947, %v949
        %v951 = vrot.slane %v935, %v950
        %v953 = vunpack.c.l.s4 1966171168
        %v954 = vunpack.c.0.s8 %v953
        %v955 = vlaneseq
        %v956 = vshrl.u32 %v955, 7
        %v957 = vsub.s32 %v954, %v956
        %v958 = vrot.slane %v936, %v957
        %v960 = vunpack.c.l.s4 1966171168
        %v961 = vunpack.c.0.s8 %v960
        %v962 = vlaneseq
        %v963 = vshrl.u32 %v962, 7
        %v964 = vsub.s32 %v961, %v963
        %v965 = vrot.slane %v937, %v964
        %v966 = vcombine.low %v944, %v951
        %v967 = vcombine.low %v958, %v965
        %v969 = vunpack.c.l.s4 1966171168
        %v970 = vunpack.c.0.s8 %v969
        %v971 = vlaneseq
        %v972 = vshrl.u32 %v971, 7
        %v973 = vsub.s32 %v970, %v972
        %v974 = vrot.slane %v966, %v973
        %v976 = vunpack.c.l.s4 1966171168
        %v977 = vunpack.c.0.s8 %v976
        %v978 = vlaneseq
        %v979 = vshrl.u32 %v978, 7
        %v980 = vsub.s32 %v977, %v979
        %v981 = vrot.slane %v967, %v980
        %v982 = vcombine.low %v974, %v981
        %983 = vset.pattern.permute.xlu0 0
        %984 = vperm.xlu0 %983, %v835
        %v985 = vpop.permute.xlu0 %984
        %986 = vset.pattern.permute.xlu0 0
        %987 = vperm.xlu0 %986, %v884
        %v988 = vpop.permute.xlu0 %987
        %989 = vset.pattern.permute.xlu0 0
        %990 = vperm.xlu0 %989, %v933
        %v991 = vpop.permute.xlu0 %990
        %992 = vset.pattern.permute.xlu0 0
        %993 = vperm.xlu0 %992, %v982
        %v994 = vpop.permute.xlu0 %993
        %v995 = vlaneseq
        %v996 = vshrl.u32 %v995, 7
        %v997 = vsub.s32 %v598, %v996
        %v998 = vrot.slane %v985, %v997
        %v999 = vlaneseq
        %v1000 = vshrl.u32 %v999, 7
        %v1001 = vsub.s32 %v603, %v1000
        %v1002 = vrot.slane %v988, %v1001
        %v1003 = vsel %vm608, %v1002, %v998
        %v1004 = vlaneseq
        %v1005 = vshrl.u32 %v1004, 7
        %v1006 = vsub.s32 %v610, %v1005
        %v1007 = vrot.slane %v991, %v1006
        %v1008 = vsel %vm615, %v1007, %v1003
        %v1009 = vlaneseq
        %v1010 = vshrl.u32 %v1009, 7
        %v1011 = vsub.s32 %v617, %v1010
        %v1012 = vrot.slane %v994, %v1011
        %v1013 = vsel %vm622, %v1012, %v1008
        %v1015 = vunpack.c.l.s4 1966171168
        %v1016 = vunpack.c.0.s8 %v1015
        %v1017 = vlaneseq
        %v1018 = vshrl.u32 %v1017, 7
        %v1019 = vsub.s32 %v1016, %v1018
        %v1020 = vrot.slane %v1013, %v1019
        %v1022 = vunpack.c.l.s4 1966171168
        %v1023 = vunpack.c.0.s8 %v1022
        %v1024 = vlaneseq
        %v1025 = vshrl.u32 %v1024, 7
        %v1026 = vsub.s32 %v1023, %v1025
        %v1027 = vrot.slane %v1020, %v1026
        %v1029 = vmax.f32 %v642, %v1027
        %1030 = vst.msk [vmem:[#allocation3] sm:$0x1] %vm640, %v1029
        // Predicated region
        $region45: #{tpu_custom_call.1} parent=35 // pred_check
          %p1031 = pneg %p232
        $region46: #{tpu_custom_call.1} parent=35 // pred_check_branch
          %1033 = sbr.rel (%p1031) target = $region48
        $region47: #{tpu_custom_call.1} parent=35 // pred_region
          %v1034 = vld [vmem:[#allocation2] sm:$0x1]
          %v1035 = vmul.f32 %v1034, 0.0625
          %s1036 = sld [smem:[#allocation4]]
          %v1037 = vstv %s1036
          %v1038 = vmul.f32 %v1035, %v1037
          %v1039 = vld [vmem:[#allocation3] sm:$0x1]
          %s1040 = sld [smem:[#allocation4 + $0x1]]
          %v1041 = vstv %s1040
          %v1042 = vmul.f32 %v1039, %v1041
          %v1043 = vadd.f32 %v1038, %v1042
          %v1044 = vld [vmem:[%s2] sm:$0xff]
          %v1045 = vld [vmem:[%s2 + $0x8] sm:$0xff]
          %v1046 = vld [vmem:[%s2 + $0x10] sm:$0xff]
          %v1047 = vld [vmem:[%s2 + $0x18] sm:$0xff]
          %vm1048 = vcmask 261120
          %v1050 = vsel %vm1048, %v1043, 0
          %1052 = vmatprep.subr.mxu0 0.0
          %v1053 = vand.u32 %v1044, 4294901760
          %1054 = vmatpush1.msra.mxu0 %v1053
          %1055 = vmatprep.subr.mxu0 0.0
          %v1056 = vand.u32 %v1045, 4294901760
          %1057 = vmatpush1.msra.mxu0 %v1056
          %1058 = vmatprep.subr.mxu0 0.0
          %v1059 = vand.u32 %v1046, 4294901760
          %1060 = vmatpush1.msra.mxu0 %v1059
          %1061 = vmatprep.subr.mxu0 0.0
          %v1062 = vand.u32 %v1047, 4294901760
          %1063 = vmatpush1.msra.mxu0 %v1062
          %1064 = vmatprep.subr.mxu0 0.0
          %1065 = vmatpush1.msra.mxu0 0.0
          %1066 = vmatprep.subr.mxu0 0.0
          %1067 = vmatpush1.msra.mxu0 0.0
          %1068 = vmatprep.subr.mxu0 0.0
          %1069 = vmatpush1.msra.mxu0 0.0
          %1070 = vmatprep.subr.mxu0 0.0
          %1071 = vmatpush1.msra.mxu0 0.0
          %1072 = vmatprep.subr.mxu0 0.0
          %1073 = vmatpush1.msra.mxu0 0.0
          %1074 = vmatprep.subr.mxu0 0.0
          %1075 = vmatpush1.msra.mxu0 0.0
          %1076 = vmatprep.subr.mxu0 0.0
          %1077 = vmatpush1.msra.mxu0 0.0
          %1078 = vmatprep.subr.mxu0 0.0
          %1079 = vmatpush1.msra.mxu0 0.0
          %1080 = vmatprep.subr.mxu0 0.0
          %1081 = vmatpush1.msra.mxu0 0.0
          %1082 = vmatprep.subr.mxu0 0.0
          %1083 = vmatpush1.msra.mxu0 0.0
          %1084 = vmatprep.subr.mxu0 0.0
          %1085 = vmatpush1.msra.mxu0 0.0
          %1086 = vmatprep.subr.mxu0 0.0
          %1087 = vmatpush1.msra.mxu0 0.0
          %1088 = vmatprep.subr.mxu0 0.0
          %1089 = vmatpush1.msra.mxu0 0.0
          %1090 = vmatprep.subr.mxu0 0.0
          %1091 = vmatpush1.msra.mxu0 0.0
          %1092 = vmatprep.subr.mxu0 0.0
          %1093 = vmatpush1.msra.mxu0 0.0
          %1094 = vmatprep.subr.mxu0 0.0
          %1095 = vmatpush1.msra.mxu0 0.0
          %1096 = vmatprep.subr.mxu0 0.0
          %1097 = vmatpush1.msra.mxu0 0.0
          %1098 = vmatprep.subr.mxu0 0.0
          %1099 = vmatpush1.msra.mxu0 0.0
          %1100 = vmatprep.subr.mxu0 0.0
          %1101 = vmatpush1.msra.mxu0 0.0
          %1102 = vmatprep.subr.mxu0 0.0
          %1103 = vmatpush1.msra.mxu0 0.0
          %1104 = vmatprep.subr.mxu0 0.0
          %1105 = vmatpush1.msra.mxu0 0.0
          %1106 = vmatprep.subr.mxu0 0.0
          %1107 = vmatpush1.msra.mxu0 0.0
          %1108 = vmatprep.subr.mxu0 0.0
          %1109 = vmatpush1.msra.mxu0 0.0
          %1110 = vmatprep.subr.mxu0 0.0
          %1111 = vmatpush1.msra.mxu0 0.0
          %1112 = vmatprep.subr.mxu0 0.0
          %1113 = vmatpush1.msra.mxu0 0.0
          %1114 = vmatprep.subr.mxu0 0.0
          %1115 = vmatpush1.msra.mxu0 0.0
          %1116 = vmatprep.subr.mxu0 0.0
          %1117 = vmatpush1.msra.mxu0 0.0
          %1118 = vmatprep.subr.mxu0 0.0
          %1119 = vmatpush1.msra.mxu0 0.0
          %1120 = vmatprep.mubr.f32.mxu0 0.0
          %v1121 = vand.u32 %v1050, 4294901760
          %v1122 = vsub.f32 %v1050, %v1121
          %v1123 = vand.u32 %v1122, 4294901760
          %v1124 = vsub.f32 %v1122, %v1123
          %v1125 = vand.u32 %v1124, 4294901760
          %1126 = vmatmul.mubr.f32.gmra.mrb[0].mxu0 %v1125
          %v1127 = vpop.f32.mrb[0].mxu0
          %v1128 = vadd.f32 0.0, %v1127
          %v1129 = vpop.f32.mrb[0].mxu0
          %1130 = vdwg.mxu0
          %1131 = vmatprep.subr.mxu0 0.0
          %v1132 = vand.u32 %v1044, 4294901760
          %v1133 = vsub.f32 %v1044, %v1132
          %v1134 = vand.u32 %v1133, 4294901760
          %v1135 = vsub.f32 %v1133, %v1134
          %v1136 = vand.u32 %v1135, 4294901760
          %1137 = vmatpush1.msra.mxu0 %v1136
          %1138 = vmatprep.subr.mxu0 0.0
          %v1139 = vand.u32 %v1045, 4294901760
          %v1140 = vsub.f32 %v1045, %v1139
          %v1141 = vand.u32 %v1140, 4294901760
          %v1142 = vsub.f32 %v1140, %v1141
          %v1143 = vand.u32 %v1142, 4294901760
          %1144 = vmatpush1.msra.mxu0 %v1143
          %1145 = vmatprep.subr.mxu0 0.0
          %v1146 = vand.u32 %v1046, 4294901760
          %v1147 = vsub.f32 %v1046, %v1146
          %v1148 = vand.u32 %v1147, 4294901760
          %v1149 = vsub.f32 %v1147, %v1148
          %v1150 = vand.u32 %v1149, 4294901760
          %1151 = vmatpush1.msra.mxu0 %v1150
          %1152 = vmatprep.subr.mxu0 0.0
          %v1153 = vand.u32 %v1047, 4294901760
          %v1154 = vsub.f32 %v1047, %v1153
          %v1155 = vand.u32 %v1154, 4294901760
          %v1156 = vsub.f32 %v1154, %v1155
          %v1157 = vand.u32 %v1156, 4294901760
          %1158 = vmatpush1.msra.mxu0 %v1157
          %1159 = vmatprep.subr.mxu0 0.0
          %1160 = vmatpush1.msra.mxu0 0.0
          %1161 = vmatprep.subr.mxu0 0.0
          %1162 = vmatpush1.msra.mxu0 0.0
          %1163 = vmatprep.subr.mxu0 0.0
          %1164 = vmatpush1.msra.mxu0 0.0
          %1165 = vmatprep.subr.mxu0 0.0
          %1166 = vmatpush1.msra.mxu0 0.0
          %1167 = vmatprep.subr.mxu0 0.0
          %1168 = vmatpush1.msra.mxu0 0.0
          %1169 = vmatprep.subr.mxu0 0.0
          %1170 = vmatpush1.msra.mxu0 0.0
          %1171 = vmatprep.subr.mxu0 0.0
          %1172 = vmatpush1.msra.mxu0 0.0
          %1173 = vmatprep.subr.mxu0 0.0
          %1174 = vmatpush1.msra.mxu0 0.0
          %1175 = vmatprep.subr.mxu0 0.0
          %1176 = vmatpush1.msra.mxu0 0.0
          %1177 = vmatprep.subr.mxu0 0.0
          %1178 = vmatpush1.msra.mxu0 0.0
          %1179 = vmatprep.subr.mxu0 0.0
          %1180 = vmatpush1.msra.mxu0 0.0
          %1181 = vmatprep.subr.mxu0 0.0
          %1182 = vmatpush1.msra.mxu0 0.0
          %1183 = vmatprep.subr.mxu0 0.0
          %1184 = vmatpush1.msra.mxu0 0.0
          %1185 = vmatprep.subr.mxu0 0.0
          %1186 = vmatpush1.msra.mxu0 0.0
          %1187 = vmatprep.subr.mxu0 0.0
          %1188 = vmatpush1.msra.mxu0 0.0
          %1189 = vmatprep.subr.mxu0 0.0
          %1190 = vmatpush1.msra.mxu0 0.0
          %1191 = vmatprep.subr.mxu0 0.0
          %1192 = vmatpush1.msra.mxu0 0.0
          %1193 = vmatprep.subr.mxu0 0.0
          %1194 = vmatpush1.msra.mxu0 0.0
          %1195 = vmatprep.subr.mxu0 0.0
          %1196 = vmatpush1.msra.mxu0 0.0
          %1197 = vmatprep.subr.mxu0 0.0
          %1198 = vmatpush1.msra.mxu0 0.0
          %1199 = vmatprep.subr.mxu0 0.0
          %1200 = vmatpush1.msra.mxu0 0.0
          %1201 = vmatprep.subr.mxu0 0.0
          %1202 = vmatpush1.msra.mxu0 0.0
          %1203 = vmatprep.subr.mxu0 0.0
          %1204 = vmatpush1.msra.mxu0 0.0
          %1205 = vmatprep.subr.mxu0 0.0
          %1206 = vmatpush1.msra.mxu0 0.0
          %1207 = vmatprep.subr.mxu0 0.0
          %1208 = vmatpush1.msra.mxu0 0.0
          %1209 = vmatprep.subr.mxu0 0.0
          %1210 = vmatpush1.msra.mxu0 0.0
          %1211 = vmatprep.subr.mxu0 0.0
          %1212 = vmatpush1.msra.mxu0 0.0
          %1213 = vmatprep.subr.mxu0 0.0
          %1214 = vmatpush1.msra.mxu0 0.0
          %1215 = vmatprep.mubr.f32.mxu0 0.0
          %v1216 = vand.u32 %v1050, 4294901760
          %1217 = vmatmul.mubr.f32.gmra.mrb[0].mxu0 %v1216
          %v1218 = vpop.f32.mrb[0].mxu0
          %v1219 = vadd.f32 %v1128, %v1218
          %v1220 = vpop.f32.mrb[0].mxu0
          %1221 = vdwg.mxu0
          %1222 = vmatprep.subr.mxu0 0.0
          %v1223 = vand.u32 %v1044, 4294901760
          %v1224 = vsub.f32 %v1044, %v1223
          %1225 = vmatpush1.msra.mxu0 %v1224
          %1226 = vmatprep.subr.mxu0 0.0
          %v1227 = vand.u32 %v1045, 4294901760
          %v1228 = vsub.f32 %v1045, %v1227
          %1229 = vmatpush1.msra.mxu0 %v1228
          %1230 = vmatprep.subr.mxu0 0.0
          %v1231 = vand.u32 %v1046, 4294901760
          %v1232 = vsub.f32 %v1046, %v1231
          %1233 = vmatpush1.msra.mxu0 %v1232
          %1234 = vmatprep.subr.mxu0 0.0
          %v1235 = vand.u32 %v1047, 4294901760
          %v1236 = vsub.f32 %v1047, %v1235
          %1237 = vmatpush1.msra.mxu0 %v1236
          %1238 = vmatprep.subr.mxu0 0.0
          %1239 = vmatpush1.msra.mxu0 0.0
          %1240 = vmatprep.subr.mxu0 0.0
          %1241 = vmatpush1.msra.mxu0 0.0
          %1242 = vmatprep.subr.mxu0 0.0
          %1243 = vmatpush1.msra.mxu0 0.0
          %1244 = vmatprep.subr.mxu0 0.0
          %1245 = vmatpush1.msra.mxu0 0.0
          %1246 = vmatprep.subr.mxu0 0.0
          %1247 = vmatpush1.msra.mxu0 0.0
          %1248 = vmatprep.subr.mxu0 0.0
          %1249 = vmatpush1.msra.mxu0 0.0
          %1250 = vmatprep.subr.mxu0 0.0
          %1251 = vmatpush1.msra.mxu0 0.0
          %1252 = vmatprep.subr.mxu0 0.0
          %1253 = vmatpush1.msra.mxu0 0.0
          %1254 = vmatprep.subr.mxu0 0.0
          %1255 = vmatpush1.msra.mxu0 0.0
          %1256 = vmatprep.subr.mxu0 0.0
          %1257 = vmatpush1.msra.mxu0 0.0
          %1258 = vmatprep.subr.mxu0 0.0
          %1259 = vmatpush1.msra.mxu0 0.0
          %1260 = vmatprep.subr.mxu0 0.0
          %1261 = vmatpush1.msra.mxu0 0.0
          %1262 = vmatprep.subr.mxu0 0.0
          %1263 = vmatpush1.msra.mxu0 0.0
          %1264 = vmatprep.subr.mxu0 0.0
          %1265 = vmatpush1.msra.mxu0 0.0
          %1266 = vmatprep.subr.mxu0 0.0
          %1267 = vmatpush1.msra.mxu0 0.0
          %1268 = vmatprep.subr.mxu0 0.0
          %1269 = vmatpush1.msra.mxu0 0.0
          %1270 = vmatprep.subr.mxu0 0.0
          %1271 = vmatpush1.msra.mxu0 0.0
          %1272 = vmatprep.subr.mxu0 0.0
          %1273 = vmatpush1.msra.mxu0 0.0
          %1274 = vmatprep.subr.mxu0 0.0
          %1275 = vmatpush1.msra.mxu0 0.0
          %1276 = vmatprep.subr.mxu0 0.0
          %1277 = vmatpush1.msra.mxu0 0.0
          %1278 = vmatprep.subr.mxu0 0.0
          %1279 = vmatpush1.msra.mxu0 0.0
          %1280 = vmatprep.subr.mxu0 0.0
          %1281 = vmatpush1.msra.mxu0 0.0
          %1282 = vmatprep.subr.mxu0 0.0
          %1283 = vmatpush1.msra.mxu0 0.0
          %1284 = vmatprep.subr.mxu0 0.0
          %1285 = vmatpush1.msra.mxu0 0.0
          %1286 = vmatprep.subr.mxu0 0.0
          %1287 = vmatpush1.msra.mxu0 0.0
          %1288 = vmatprep.subr.mxu0 0.0
          %1289 = vmatpush1.msra.mxu0 0.0
          %1290 = vmatprep.subr.mxu0 0.0
          %1291 = vmatpush1.msra.mxu0 0.0
          %1292 = vmatprep.subr.mxu0 0.0
          %1293 = vmatpush1.msra.mxu0 0.0
          %1294 = vmatprep.mubr.f32.mxu0 0.0
          %v1295 = vand.u32 %v1050, 4294901760
          %v1296 = vsub.f32 %v1050, %v1295
          %1297 = vmatmul.mubr.f32.gmra.mrb[0].mxu0 %v1296
          %v1298 = vpop.f32.mrb[0].mxu0
          %v1299 = vadd.f32 %v1219, %v1298
          %v1300 = vpop.f32.mrb[0].mxu0
          %1301 = vdwg.mxu0
          %1302 = vmatprep.subr.mxu0 0.0
          %v1303 = vand.u32 %v1044, 4294901760
          %1304 = vmatpush1.msra.mxu0 %v1303
          %1305 = vmatprep.subr.mxu0 0.0
          %v1306 = vand.u32 %v1045, 4294901760
          %1307 = vmatpush1.msra.mxu0 %v1306
          %1308 = vmatprep.subr.mxu0 0.0
          %v1309 = vand.u32 %v1046, 4294901760
          %1310 = vmatpush1.msra.mxu0 %v1309
          %1311 = vmatprep.subr.mxu0 0.0
          %v1312 = vand.u32 %v1047, 4294901760
          %1313 = vmatpush1.msra.mxu0 %v1312
          %1314 = vmatprep.subr.mxu0 0.0
          %1315 = vmatpush1.msra.mxu0 0.0
          %1316 = vmatprep.subr.mxu0 0.0
          %1317 = vmatpush1.msra.mxu0 0.0
          %1318 = vmatprep.subr.mxu0 0.0
          %1319 = vmatpush1.msra.mxu0 0.0
          %1320 = vmatprep.subr.mxu0 0.0
          %1321 = vmatpush1.msra.mxu0 0.0
          %1322 = vmatprep.subr.mxu0 0.0
          %1323 = vmatpush1.msra.mxu0 0.0
          %1324 = vmatprep.subr.mxu0 0.0
          %1325 = vmatpush1.msra.mxu0 0.0
          %1326 = vmatprep.subr.mxu0 0.0
          %1327 = vmatpush1.msra.mxu0 0.0
          %1328 = vmatprep.subr.mxu0 0.0
          %1329 = vmatpush1.msra.mxu0 0.0
          %1330 = vmatprep.subr.mxu0 0.0
          %1331 = vmatpush1.msra.mxu0 0.0
          %1332 = vmatprep.subr.mxu0 0.0
          %1333 = vmatpush1.msra.mxu0 0.0
          %1334 = vmatprep.subr.mxu0 0.0
          %1335 = vmatpush1.msra.mxu0 0.0
          %1336 = vmatprep.subr.mxu0 0.0
          %1337 = vmatpush1.msra.mxu0 0.0
          %1338 = vmatprep.subr.mxu0 0.0
          %1339 = vmatpush1.msra.mxu0 0.0
          %1340 = vmatprep.subr.mxu0 0.0
          %1341 = vmatpush1.msra.mxu0 0.0
          %1342 = vmatprep.subr.mxu0 0.0
          %1343 = vmatpush1.msra.mxu0 0.0
          %1344 = vmatprep.subr.mxu0 0.0
          %1345 = vmatpush1.msra.mxu0 0.0
          %1346 = vmatprep.subr.mxu0 0.0
          %1347 = vmatpush1.msra.mxu0 0.0
          %1348 = vmatprep.subr.mxu0 0.0
          %1349 = vmatpush1.msra.mxu0 0.0
          %1350 = vmatprep.subr.mxu0 0.0
          %1351 = vmatpush1.msra.mxu0 0.0
          %1352 = vmatprep.subr.mxu0 0.0
          %1353 = vmatpush1.msra.mxu0 0.0
          %1354 = vmatprep.subr.mxu0 0.0
          %1355 = vmatpush1.msra.mxu0 0.0
          %1356 = vmatprep.subr.mxu0 0.0
          %1357 = vmatpush1.msra.mxu0 0.0
          %1358 = vmatprep.subr.mxu0 0.0
          %1359 = vmatpush1.msra.mxu0 0.0
          %1360 = vmatprep.subr.mxu0 0.0
          %1361 = vmatpush1.msra.mxu0 0.0
          %1362 = vmatprep.subr.mxu0 0.0
          %1363 = vmatpush1.msra.mxu0 0.0
          %1364 = vmatprep.subr.mxu0 0.0
          %1365 = vmatpush1.msra.mxu0 0.0
          %1366 = vmatprep.subr.mxu0 0.0
          %1367 = vmatpush1.msra.mxu0 0.0
          %1368 = vmatprep.subr.mxu0 0.0
          %1369 = vmatpush1.msra.mxu0 0.0
          %1370 = vmatprep.mubr.f32.mxu0 0.0
          %v1371 = vand.u32 %v1050, 4294901760
          %v1372 = vsub.f32 %v1050, %v1371
          %v1373 = vand.u32 %v1372, 4294901760
          %1374 = vmatmul.mubr.f32.gmra.mrb[0].mxu0 %v1373
          %v1375 = vpop.f32.mrb[0].mxu0
          %v1376 = vadd.f32 %v1299, %v1375
          %v1377 = vpop.f32.mrb[0].mxu0
          %1378 = vdwg.mxu0
          %1379 = vmatprep.subr.mxu0 0.0
          %v1380 = vand.u32 %v1044, 4294901760
          %v1381 = vsub.f32 %v1044, %v1380
          %v1382 = vand.u32 %v1381, 4294901760
          %1383 = vmatpush1.msra.mxu0 %v1382
          %1384 = vmatprep.subr.mxu0 0.0
          %v1385 = vand.u32 %v1045, 4294901760
          %v1386 = vsub.f32 %v1045, %v1385
          %v1387 = vand.u32 %v1386, 4294901760
          %1388 = vmatpush1.msra.mxu0 %v1387
          %1389 = vmatprep.subr.mxu0 0.0
          %v1390 = vand.u32 %v1046, 4294901760
          %v1391 = vsub.f32 %v1046, %v1390
          %v1392 = vand.u32 %v1391, 4294901760
          %1393 = vmatpush1.msra.mxu0 %v1392
          %1394 = vmatprep.subr.mxu0 0.0
          %v1395 = vand.u32 %v1047, 4294901760
          %v1396 = vsub.f32 %v1047, %v1395
          %v1397 = vand.u32 %v1396, 4294901760
          %1398 = vmatpush1.msra.mxu0 %v1397
          %1399 = vmatprep.subr.mxu0 0.0
          %1400 = vmatpush1.msra.mxu0 0.0
          %1401 = vmatprep.subr.mxu0 0.0
          %1402 = vmatpush1.msra.mxu0 0.0
          %1403 = vmatprep.subr.mxu0 0.0
          %1404 = vmatpush1.msra.mxu0 0.0
          %1405 = vmatprep.subr.mxu0 0.0
          %1406 = vmatpush1.msra.mxu0 0.0
          %1407 = vmatprep.subr.mxu0 0.0
          %1408 = vmatpush1.msra.mxu0 0.0
          %1409 = vmatprep.subr.mxu0 0.0
          %1410 = vmatpush1.msra.mxu0 0.0
          %1411 = vmatprep.subr.mxu0 0.0
          %1412 = vmatpush1.msra.mxu0 0.0
          %1413 = vmatprep.subr.mxu0 0.0
          %1414 = vmatpush1.msra.mxu0 0.0
          %1415 = vmatprep.subr.mxu0 0.0
          %1416 = vmatpush1.msra.mxu0 0.0
          %1417 = vmatprep.subr.mxu0 0.0
          %1418 = vmatpush1.msra.mxu0 0.0
          %1419 = vmatprep.subr.mxu0 0.0
          %1420 = vmatpush1.msra.mxu0 0.0
          %1421 = vmatprep.subr.mxu0 0.0
          %1422 = vmatpush1.msra.mxu0 0.0
          %1423 = vmatprep.subr.mxu0 0.0
          %1424 = vmatpush1.msra.mxu0 0.0
          %1425 = vmatprep.subr.mxu0 0.0
          %1426 = vmatpush1.msra.mxu0 0.0
          %1427 = vmatprep.subr.mxu0 0.0
          %1428 = vmatpush1.msra.mxu0 0.0
          %1429 = vmatprep.subr.mxu0 0.0
          %1430 = vmatpush1.msra.mxu0 0.0
          %1431 = vmatprep.subr.mxu0 0.0
          %1432 = vmatpush1.msra.mxu0 0.0
          %1433 = vmatprep.subr.mxu0 0.0
          %1434 = vmatpush1.msra.mxu0 0.0
          %1435 = vmatprep.subr.mxu0 0.0
          %1436 = vmatpush1.msra.mxu0 0.0
          %1437 = vmatprep.subr.mxu0 0.0
          %1438 = vmatpush1.msra.mxu0 0.0
          %1439 = vmatprep.subr.mxu0 0.0
          %1440 = vmatpush1.msra.mxu0 0.0
          %1441 = vmatprep.subr.mxu0 0.0
          %1442 = vmatpush1.msra.mxu0 0.0
          %1443 = vmatprep.subr.mxu0 0.0
          %1444 = vmatpush1.msra.mxu0 0.0
          %1445 = vmatprep.subr.mxu0 0.0
          %1446 = vmatpush1.msra.mxu0 0.0
          %1447 = vmatprep.subr.mxu0 0.0
          %1448 = vmatpush1.msra.mxu0 0.0
          %1449 = vmatprep.subr.mxu0 0.0
          %1450 = vmatpush1.msra.mxu0 0.0
          %1451 = vmatprep.subr.mxu0 0.0
          %1452 = vmatpush1.msra.mxu0 0.0
          %1453 = vmatprep.subr.mxu0 0.0
          %1454 = vmatpush1.msra.mxu0 0.0
          %1455 = vmatprep.mubr.f32.mxu0 0.0
          %v1456 = vand.u32 %v1050, 4294901760
          %1457 = vmatmul.mubr.f32.gmra.mrb[0].mxu0 %v1456
          %v1458 = vpop.f32.mrb[0].mxu0
          %v1459 = vadd.f32 %v1376, %v1458
          %v1460 = vpop.f32.mrb[0].mxu0
          %1461 = vdwg.mxu0
          %1462 = vmatprep.subr.mxu0 0.0
          %v1463 = vand.u32 %v1044, 4294901760
          %1464 = vmatpush1.msra.mxu0 %v1463
          %1465 = vmatprep.subr.mxu0 0.0
          %v1466 = vand.u32 %v1045, 4294901760
          %1467 = vmatpush1.msra.mxu0 %v1466
          %1468 = vmatprep.subr.mxu0 0.0
          %v1469 = vand.u32 %v1046, 4294901760
          %1470 = vmatpush1.msra.mxu0 %v1469
          %1471 = vmatprep.subr.mxu0 0.0
          %v1472 = vand.u32 %v1047, 4294901760
          %1473 = vmatpush1.msra.mxu0 %v1472
          %1474 = vmatprep.subr.mxu0 0.0
          %1475 = vmatpush1.msra.mxu0 0.0
          %1476 = vmatprep.subr.mxu0 0.0
          %1477 = vmatpush1.msra.mxu0 0.0
          %1478 = vmatprep.subr.mxu0 0.0
          %1479 = vmatpush1.msra.mxu0 0.0
          %1480 = vmatprep.subr.mxu0 0.0
          %1481 = vmatpush1.msra.mxu0 0.0
          %1482 = vmatprep.subr.mxu0 0.0
          %1483 = vmatpush1.msra.mxu0 0.0
          %1484 = vmatprep.subr.mxu0 0.0
          %1485 = vmatpush1.msra.mxu0 0.0
          %1486 = vmatprep.subr.mxu0 0.0
          %1487 = vmatpush1.msra.mxu0 0.0
          %1488 = vmatprep.subr.mxu0 0.0
          %1489 = vmatpush1.msra.mxu0 0.0
          %1490 = vmatprep.subr.mxu0 0.0
          %1491 = vmatpush1.msra.mxu0 0.0
          %1492 = vmatprep.subr.mxu0 0.0
          %1493 = vmatpush1.msra.mxu0 0.0
          %1494 = vmatprep.subr.mxu0 0.0
          %1495 = vmatpush1.msra.mxu0 0.0
          %1496 = vmatprep.subr.mxu0 0.0
          %1497 = vmatpush1.msra.mxu0 0.0
          %1498 = vmatprep.subr.mxu0 0.0
          %1499 = vmatpush1.msra.mxu0 0.0
          %1500 = vmatprep.subr.mxu0 0.0
          %1501 = vmatpush1.msra.mxu0 0.0
          %1502 = vmatprep.subr.mxu0 0.0
          %1503 = vmatpush1.msra.mxu0 0.0
          %1504 = vmatprep.subr.mxu0 0.0
          %1505 = vmatpush1.msra.mxu0 0.0
          %1506 = vmatprep.subr.mxu0 0.0
          %1507 = vmatpush1.msra.mxu0 0.0
          %1508 = vmatprep.subr.mxu0 0.0
          %1509 = vmatpush1.msra.mxu0 0.0
          %1510 = vmatprep.subr.mxu0 0.0
          %1511 = vmatpush1.msra.mxu0 0.0
          %1512 = vmatprep.subr.mxu0 0.0
          %1513 = vmatpush1.msra.mxu0 0.0
          %1514 = vmatprep.subr.mxu0 0.0
          %1515 = vmatpush1.msra.mxu0 0.0
          %1516 = vmatprep.subr.mxu0 0.0
          %1517 = vmatpush1.msra.mxu0 0.0
          %1518 = vmatprep.subr.mxu0 0.0
          %1519 = vmatpush1.msra.mxu0 0.0
          %1520 = vmatprep.subr.mxu0 0.0
          %1521 = vmatpush1.msra.mxu0 0.0
          %1522 = vmatprep.subr.mxu0 0.0
          %1523 = vmatpush1.msra.mxu0 0.0
          %1524 = vmatprep.subr.mxu0 0.0
          %1525 = vmatpush1.msra.mxu0 0.0
          %1526 = vmatprep.subr.mxu0 0.0
          %1527 = vmatpush1.msra.mxu0 0.0
          %1528 = vmatprep.subr.mxu0 0.0
          %1529 = vmatpush1.msra.mxu0 0.0
          %1530 = vmatprep.mubr.f32.mxu0 0.0
          %v1531 = vand.u32 %v1050, 4294901760
          %1532 = vmatmul.mubr.f32.gmra.mrb[0].mxu0 %v1531
          %v1533 = vpop.f32.mrb[0].mxu0
          %v1534 = vadd.f32 %v1459, %v1533
          %v1535 = vpop.f32.mrb[0].mxu0
          %1536 = vdwg.mxu0
          %v1537 = vmax.f32 %v1534, 0.0
          %v1538 = vand.u32 2147483647, %v1534
          %v1539 = vsub.f32 0.0, %v1538
          %v1540 = vmul.f32 %v1539, 1.442695
          %v1541 = vpow.pop %v1540
          %v1542 = vadd.f32 %v1541, 1.0
          %v1543 = vlog2.pop %v1542
          %v1544 = vmul.f32 %v1543, 0.6931472
          %v1545 = vadd.f32 %v1537, %v1544
          %v1546 = vtanh.pop %v1545
          %v1547 = vmul.f32 %v1534, %v1546
          %v1548 = vld [vmem:[%s3] sm:$0xff]
          %v1549 = vld [vmem:[%s3 + $0x8] sm:$0xff]
          %v1550 = vld [vmem:[%s3 + $0x10] sm:$0xff]
          %v1551 = vld [vmem:[%s3 + $0x18] sm:$0xff]
          %v1553 = vsel %vm1048, %v1547, 0
          %1555 = vmatprep.subr.mxu0 0.0
          %v1556 = vand.u32 %v1548, 4294901760
          %1557 = vmatpush1.msra.mxu0 %v1556
          %1558 = vmatprep.subr.mxu0 0.0
          %v1559 = vand.u32 %v1549, 4294901760
          %1560 = vmatpush1.msra.mxu0 %v1559
          %1561 = vmatprep.subr.mxu0 0.0
          %v1562 = vand.u32 %v1550, 4294901760
          %1563 = vmatpush1.msra.mxu0 %v1562
          %1564 = vmatprep.subr.mxu0 0.0
          %v1565 = vand.u32 %v1551, 4294901760
          %1566 = vmatpush1.msra.mxu0 %v1565
          %1567 = vmatprep.subr.mxu0 0.0
          %1568 = vmatpush1.msra.mxu0 0.0
          %1569 = vmatprep.subr.mxu0 0.0
          %1570 = vmatpush1.msra.mxu0 0.0
          %1571 = vmatprep.subr.mxu0 0.0
          %1572 = vmatpush1.msra.mxu0 0.0
          %1573 = vmatprep.subr.mxu0 0.0
          %1574 = vmatpush1.msra.mxu0 0.0
          %1575 = vmatprep.subr.mxu0 0.0
          %1576 = vmatpush1.msra.mxu0 0.0
          %1577 = vmatprep.subr.mxu0 0.0
          %1578 = vmatpush1.msra.mxu0 0.0
          %1579 = vmatprep.subr.mxu0 0.0
          %1580 = vmatpush1.msra.mxu0 0.0
          %1581 = vmatprep.subr.mxu0 0.0
          %1582 = vmatpush1.msra.mxu0 0.0
          %1583 = vmatprep.subr.mxu0 0.0
          %1584 = vmatpush1.msra.mxu0 0.0
          %1585 = vmatprep.subr.mxu0 0.0
          %1586 = vmatpush1.msra.mxu0 0.0
          %1587 = vmatprep.subr.mxu0 0.0
          %1588 = vmatpush1.msra.mxu0 0.0
          %1589 = vmatprep.subr.mxu0 0.0
          %1590 = vmatpush1.msra.mxu0 0.0
          %1591 = vmatprep.subr.mxu0 0.0
          %1592 = vmatpush1.msra.mxu0 0.0
          %1593 = vmatprep.subr.mxu0 0.0
          %1594 = vmatpush1.msra.mxu0 0.0
          %1595 = vmatprep.subr.mxu0 0.0
          %1596 = vmatpush1.msra.mxu0 0.0
          %1597 = vmatprep.subr.mxu0 0.0
          %1598 = vmatpush1.msra.mxu0 0.0
          %1599 = vmatprep.subr.mxu0 0.0
          %1600 = vmatpush1.msra.mxu0 0.0
          %1601 = vmatprep.subr.mxu0 0.0
          %1602 = vmatpush1.msra.mxu0 0.0
          %1603 = vmatprep.subr.mxu0 0.0
          %1604 = vmatpush1.msra.mxu0 0.0
          %1605 = vmatprep.subr.mxu0 0.0
          %1606 = vmatpush1.msra.mxu0 0.0
          %1607 = vmatprep.subr.mxu0 0.0
          %1608 = vmatpush1.msra.mxu0 0.0
          %1609 = vmatprep.subr.mxu0 0.0
          %1610 = vmatpush1.msra.mxu0 0.0
          %1611 = vmatprep.subr.mxu0 0.0
          %1612 = vmatpush1.msra.mxu0 0.0
          %1613 = vmatprep.subr.mxu0 0.0
          %1614 = vmatpush1.msra.mxu0 0.0
          %1615 = vmatprep.subr.mxu0 0.0
          %1616 = vmatpush1.msra.mxu0 0.0
          %1617 = vmatprep.subr.mxu0 0.0
          %1618 = vmatpush1.msra.mxu0 0.0
          %1619 = vmatprep.subr.mxu0 0.0
          %1620 = vmatpush1.msra.mxu0 0.0
          %1621 = vmatprep.subr.mxu0 0.0
          %1622 = vmatpush1.msra.mxu0 0.0
          %1623 = vmatprep.mubr.f32.mxu0 0.0
          %v1624 = vand.u32 %v1553, 4294901760
          %v1625 = vsub.f32 %v1553, %v1624
          %v1626 = vand.u32 %v1625, 4294901760
          %v1627 = vsub.f32 %v1625, %v1626
          %v1628 = vand.u32 %v1627, 4294901760
          %1629 = vmatmul.mubr.f32.gmra.mrb[0].mxu0 %v1628
          %v1630 = vpop.f32.mrb[0].mxu0
          %v1631 = vadd.f32 0.0, %v1630
          %v1632 = vpop.f32.mrb[0].mxu0
          %1633 = vdwg.mxu0
          %1634 = vmatprep.subr.mxu0 0.0
          %v1635 = vand.u32 %v1548, 4294901760
          %v1636 = vsub.f32 %v1548, %v1635
          %v1637 = vand.u32 %v1636, 4294901760
          %v1638 = vsub.f32 %v1636, %v1637
          %v1639 = vand.u32 %v1638, 4294901760
          %1640 = vmatpush1.msra.mxu0 %v1639
          %1641 = vmatprep.subr.mxu0 0.0
          %v1642 = vand.u32 %v1549, 4294901760
          %v1643 = vsub.f32 %v1549, %v1642
          %v1644 = vand.u32 %v1643, 4294901760
          %v1645 = vsub.f32 %v1643, %v1644
          %v1646 = vand.u32 %v1645, 4294901760
          %1647 = vmatpush1.msra.mxu0 %v1646
          %1648 = vmatprep.subr.mxu0 0.0
          %v1649 = vand.u32 %v1550, 4294901760
          %v1650 = vsub.f32 %v1550, %v1649
          %v1651 = vand.u32 %v1650, 4294901760
          %v1652 = vsub.f32 %v1650, %v1651
          %v1653 = vand.u32 %v1652, 4294901760
          %1654 = vmatpush1.msra.mxu0 %v1653
          %1655 = vmatprep.subr.mxu0 0.0
          %v1656 = vand.u32 %v1551, 4294901760
          %v1657 = vsub.f32 %v1551, %v1656
          %v1658 = vand.u32 %v1657, 4294901760
          %v1659 = vsub.f32 %v1657, %v1658
          %v1660 = vand.u32 %v1659, 4294901760
          %1661 = vmatpush1.msra.mxu0 %v1660
          %1662 = vmatprep.subr.mxu0 0.0
          %1663 = vmatpush1.msra.mxu0 0.0
          %1664 = vmatprep.subr.mxu0 0.0
          %1665 = vmatpush1.msra.mxu0 0.0
          %1666 = vmatprep.subr.mxu0 0.0
          %1667 = vmatpush1.msra.mxu0 0.0
          %1668 = vmatprep.subr.mxu0 0.0
          %1669 = vmatpush1.msra.mxu0 0.0
          %1670 = vmatprep.subr.mxu0 0.0
          %1671 = vmatpush1.msra.mxu0 0.0
          %1672 = vmatprep.subr.mxu0 0.0
          %1673 = vmatpush1.msra.mxu0 0.0
          %1674 = vmatprep.subr.mxu0 0.0
          %1675 = vmatpush1.msra.mxu0 0.0
          %1676 = vmatprep.subr.mxu0 0.0
          %1677 = vmatpush1.msra.mxu0 0.0
          %1678 = vmatprep.subr.mxu0 0.0
          %1679 = vmatpush1.msra.mxu0 0.0
          %1680 = vmatprep.subr.mxu0 0.0
          %1681 = vmatpush1.msra.mxu0 0.0
          %1682 = vmatprep.subr.mxu0 0.0
          %1683 = vmatpush1.msra.mxu0 0.0
          %1684 = vmatprep.subr.mxu0 0.0
          %1685 = vmatpush1.msra.mxu0 0.0
          %1686 = vmatprep.subr.mxu0 0.0
          %1687 = vmatpush1.msra.mxu0 0.0
          %1688 = vmatprep.subr.mxu0 0.0
          %1689 = vmatpush1.msra.mxu0 0.0
          %1690 = vmatprep.subr.mxu0 0.0
          %1691 = vmatpush1.msra.mxu0 0.0
          %1692 = vmatprep.subr.mxu0 0.0
          %1693 = vmatpush1.msra.mxu0 0.0
          %1694 = vmatprep.subr.mxu0 0.0
          %1695 = vmatpush1.msra.mxu0 0.0
          %1696 = vmatprep.subr.mxu0 0.0
          %1697 = vmatpush1.msra.mxu0 0.0
          %1698 = vmatprep.subr.mxu0 0.0
          %1699 = vmatpush1.msra.mxu0 0.0
          %1700 = vmatprep.subr.mxu0 0.0
          %1701 = vmatpush1.msra.mxu0 0.0
          %1702 = vmatprep.subr.mxu0 0.0
          %1703 = vmatpush1.msra.mxu0 0.0
          %1704 = vmatprep.subr.mxu0 0.0
          %1705 = vmatpush1.msra.mxu0 0.0
          %1706 = vmatprep.subr.mxu0 0.0
          %1707 = vmatpush1.msra.mxu0 0.0
          %1708 = vmatprep.subr.mxu0 0.0
          %1709 = vmatpush1.msra.mxu0 0.0
          %1710 = vmatprep.subr.mxu0 0.0
          %1711 = vmatpush1.msra.mxu0 0.0
          %1712 = vmatprep.subr.mxu0 0.0
          %1713 = vmatpush1.msra.mxu0 0.0
          %1714 = vmatprep.subr.mxu0 0.0
          %1715 = vmatpush1.msra.mxu0 0.0
          %1716 = vmatprep.subr.mxu0 0.0
          %1717 = vmatpush1.msra.mxu0 0.0
          %1718 = vmatprep.mubr.f32.mxu0 0.0
          %v1719 = vand.u32 %v1553, 4294901760
          %1720 = vmatmul.mubr.f32.gmra.mrb[0].mxu0 %v1719
          %v1721 = vpop.f32.mrb[0].mxu0
          %v1722 = vadd.f32 %v1631, %v1721
          %v1723 = vpop.f32.mrb[0].mxu0
          %1724 = vdwg.mxu0
          %1725 = vmatprep.subr.mxu0 0.0
          %v1726 = vand.u32 %v1548, 4294901760
          %v1727 = vsub.f32 %v1548, %v1726
          %1728 = vmatpush1.msra.mxu0 %v1727
          %1729 = vmatprep.subr.mxu0 0.0
          %v1730 = vand.u32 %v1549, 4294901760
          %v1731 = vsub.f32 %v1549, %v1730
          %1732 = vmatpush1.msra.mxu0 %v1731
          %1733 = vmatprep.subr.mxu0 0.0
          %v1734 = vand.u32 %v1550, 4294901760
          %v1735 = vsub.f32 %v1550, %v1734
          %1736 = vmatpush1.msra.mxu0 %v1735
          %1737 = vmatprep.subr.mxu0 0.0
          %v1738 = vand.u32 %v1551, 4294901760
          %v1739 = vsub.f32 %v1551, %v1738
          %1740 = vmatpush1.msra.mxu0 %v1739
          %1741 = vmatprep.subr.mxu0 0.0
          %1742 = vmatpush1.msra.mxu0 0.0
          %1743 = vmatprep.subr.mxu0 0.0
          %1744 = vmatpush1.msra.mxu0 0.0
          %1745 = vmatprep.subr.mxu0 0.0
          %1746 = vmatpush1.msra.mxu0 0.0
          %1747 = vmatprep.subr.mxu0 0.0
          %1748 = vmatpush1.msra.mxu0 0.0
          %1749 = vmatprep.subr.mxu0 0.0
          %1750 = vmatpush1.msra.mxu0 0.0
          %1751 = vmatprep.subr.mxu0 0.0
          %1752 = vmatpush1.msra.mxu0 0.0
          %1753 = vmatprep.subr.mxu0 0.0
          %1754 = vmatpush1.msra.mxu0 0.0
          %1755 = vmatprep.subr.mxu0 0.0
          %1756 = vmatpush1.msra.mxu0 0.0
          %1757 = vmatprep.subr.mxu0 0.0
          %1758 = vmatpush1.msra.mxu0 0.0
          %1759 = vmatprep.subr.mxu0 0.0
          %1760 = vmatpush1.msra.mxu0 0.0
          %1761 = vmatprep.subr.mxu0 0.0
          %1762 = vmatpush1.msra.mxu0 0.0
          %1763 = vmatprep.subr.mxu0 0.0
          %1764 = vmatpush1.msra.mxu0 0.0
          %1765 = vmatprep.subr.mxu0 0.0
          %1766 = vmatpush1.msra.mxu0 0.0
          %1767 = vmatprep.subr.mxu0 0.0
          %1768 = vmatpush1.msra.mxu0 0.0
          %1769 = vmatprep.subr.mxu0 0.0
          %1770 = vmatpush1.msra.mxu0 0.0
          %1771 = vmatprep.subr.mxu0 0.0
          %1772 = vmatpush1.msra.mxu0 0.0
          %1773 = vmatprep.subr.mxu0 0.0
          %1774 = vmatpush1.msra.mxu0 0.0
          %1775 = vmatprep.subr.mxu0 0.0
          %1776 = vmatpush1.msra.mxu0 0.0
          %1777 = vmatprep.subr.mxu0 0.0
          %1778 = vmatpush1.msra.mxu0 0.0
          %1779 = vmatprep.subr.mxu0 0.0
          %1780 = vmatpush1.msra.mxu0 0.0
          %1781 = vmatprep.subr.mxu0 0.0
          %1782 = vmatpush1.msra.mxu0 0.0
          %1783 = vmatprep.subr.mxu0 0.0
          %1784 = vmatpush1.msra.mxu0 0.0
          %1785 = vmatprep.subr.mxu0 0.0
          %1786 = vmatpush1.msra.mxu0 0.0
          %1787 = vmatprep.subr.mxu0 0.0
          %1788 = vmatpush1.msra.mxu0 0.0
          %1789 = vmatprep.subr.mxu0 0.0
          %1790 = vmatpush1.msra.mxu0 0.0
          %1791 = vmatprep.subr.mxu0 0.0
          %1792 = vmatpush1.msra.mxu0 0.0
          %1793 = vmatprep.subr.mxu0 0.0
          %1794 = vmatpush1.msra.mxu0 0.0
          %1795 = vmatprep.subr.mxu0 0.0
          %1796 = vmatpush1.msra.mxu0 0.0
          %1797 = vmatprep.mubr.f32.mxu0 0.0
          %v1798 = vand.u32 %v1553, 4294901760
          %v1799 = vsub.f32 %v1553, %v1798
          %1800 = vmatmul.mubr.f32.gmra.mrb[0].mxu0 %v1799
          %v1801 = vpop.f32.mrb[0].mxu0
          %v1802 = vadd.f32 %v1722, %v1801
          %v1803 = vpop.f32.mrb[0].mxu0
          %1804 = vdwg.mxu0
          %1805 = vmatprep.subr.mxu0 0.0
          %v1806 = vand.u32 %v1548, 4294901760
          %1807 = vmatpush1.msra.mxu0 %v1806
          %1808 = vmatprep.subr.mxu0 0.0
          %v1809 = vand.u32 %v1549, 4294901760
          %1810 = vmatpush1.msra.mxu0 %v1809
          %1811 = vmatprep.subr.mxu0 0.0
          %v1812 = vand.u32 %v1550, 4294901760
          %1813 = vmatpush1.msra.mxu0 %v1812
          %1814 = vmatprep.subr.mxu0 0.0
          %v1815 = vand.u32 %v1551, 4294901760
          %1816 = vmatpush1.msra.mxu0 %v1815
          %1817 = vmatprep.subr.mxu0 0.0
          %1818 = vmatpush1.msra.mxu0 0.0
          %1819 = vmatprep.subr.mxu0 0.0
          %1820 = vmatpush1.msra.mxu0 0.0
          %1821 = vmatprep.subr.mxu0 0.0
          %1822 = vmatpush1.msra.mxu0 0.0
          %1823 = vmatprep.subr.mxu0 0.0
          %1824 = vmatpush1.msra.mxu0 0.0
          %1825 = vmatprep.subr.mxu0 0.0
          %1826 = vmatpush1.msra.mxu0 0.0
          %1827 = vmatprep.subr.mxu0 0.0
          %1828 = vmatpush1.msra.mxu0 0.0
          %1829 = vmatprep.subr.mxu0 0.0
          %1830 = vmatpush1.msra.mxu0 0.0
          %1831 = vmatprep.subr.mxu0 0.0
          %1832 = vmatpush1.msra.mxu0 0.0
          %1833 = vmatprep.subr.mxu0 0.0
          %1834 = vmatpush1.msra.mxu0 0.0
          %1835 = vmatprep.subr.mxu0 0.0
          %1836 = vmatpush1.msra.mxu0 0.0
          %1837 = vmatprep.subr.mxu0 0.0
          %1838 = vmatpush1.msra.mxu0 0.0
          %1839 = vmatprep.subr.mxu0 0.0
          %1840 = vmatpush1.msra.mxu0 0.0
          %1841 = vmatprep.subr.mxu0 0.0
          %1842 = vmatpush1.msra.mxu0 0.0
          %1843 = vmatprep.subr.mxu0 0.0
          %1844 = vmatpush1.msra.mxu0 0.0
          %1845 = vmatprep.subr.mxu0 0.0
          %1846 = vmatpush1.msra.mxu0 0.0
          %1847 = vmatprep.subr.mxu0 0.0
          %1848 = vmatpush1.msra.mxu0 0.0
          %1849 = vmatprep.subr.mxu0 0.0
          %1850 = vmatpush1.msra.mxu0 0.0
          %1851 = vmatprep.subr.mxu0 0.0
          %1852 = vmatpush1.msra.mxu0 0.0
          %1853 = vmatprep.subr.mxu0 0.0
          %1854 = vmatpush1.msra.mxu0 0.0
          %1855 = vmatprep.subr.mxu0 0.0
          %1856 = vmatpush1.msra.mxu0 0.0
          %1857 = vmatprep.subr.mxu0 0.0
          %1858 = vmatpush1.msra.mxu0 0.0
          %1859 = vmatprep.subr.mxu0 0.0
          %1860 = vmatpush1.msra.mxu0 0.0
          %1861 = vmatprep.subr.mxu0 0.0
          %1862 = vmatpush1.msra.mxu0 0.0
          %1863 = vmatprep.subr.mxu0 0.0
          %1864 = vmatpush1.msra.mxu0 0.0
          %1865 = vmatprep.subr.mxu0 0.0
          %1866 = vmatpush1.msra.mxu0 0.0
          %1867 = vmatprep.subr.mxu0 0.0
          %1868 = vmatpush1.msra.mxu0 0.0
          %1869 = vmatprep.subr.mxu0 0.0
          %1870 = vmatpush1.msra.mxu0 0.0
          %1871 = vmatprep.subr.mxu0 0.0
          %1872 = vmatpush1.msra.mxu0 0.0
          %1873 = vmatprep.mubr.f32.mxu0 0.0
          %v1874 = vand.u32 %v1553, 4294901760
          %v1875 = vsub.f32 %v1553, %v1874
          %v1876 = vand.u32 %v1875, 4294901760
          %1877 = vmatmul.mubr.f32.gmra.mrb[0].mxu0 %v1876
          %v1878 = vpop.f32.mrb[0].mxu0
          %v1879 = vadd.f32 %v1802, %v1878
          %v1880 = vpop.f32.mrb[0].mxu0
          %1881 = vdwg.mxu0
          %1882 = vmatprep.subr.mxu0 0.0
          %v1883 = vand.u32 %v1548, 4294901760
          %v1884 = vsub.f32 %v1548, %v1883
          %v1885 = vand.u32 %v1884, 4294901760
          %1886 = vmatpush1.msra.mxu0 %v1885
          %1887 = vmatprep.subr.mxu0 0.0
          %v1888 = vand.u32 %v1549, 4294901760
          %v1889 = vsub.f32 %v1549, %v1888
          %v1890 = vand.u32 %v1889, 4294901760
          %1891 = vmatpush1.msra.mxu0 %v1890
          %1892 = vmatprep.subr.mxu0 0.0
          %v1893 = vand.u32 %v1550, 4294901760
          %v1894 = vsub.f32 %v1550, %v1893
          %v1895 = vand.u32 %v1894, 4294901760
          %1896 = vmatpush1.msra.mxu0 %v1895
          %1897 = vmatprep.subr.mxu0 0.0
          %v1898 = vand.u32 %v1551, 4294901760
          %v1899 = vsub.f32 %v1551, %v1898
          %v1900 = vand.u32 %v1899, 4294901760
          %1901 = vmatpush1.msra.mxu0 %v1900
          %1902 = vmatprep.subr.mxu0 0.0
          %1903 = vmatpush1.msra.mxu0 0.0
          %1904 = vmatprep.subr.mxu0 0.0
          %1905 = vmatpush1.msra.mxu0 0.0
          %1906 = vmatprep.subr.mxu0 0.0
          %1907 = vmatpush1.msra.mxu0 0.0
          %1908 = vmatprep.subr.mxu0 0.0
          %1909 = vmatpush1.msra.mxu0 0.0
          %1910 = vmatprep.subr.mxu0 0.0
          %1911 = vmatpush1.msra.mxu0 0.0
          %1912 = vmatprep.subr.mxu0 0.0
          %1913 = vmatpush1.msra.mxu0 0.0
          %1914 = vmatprep.subr.mxu0 0.0
          %1915 = vmatpush1.msra.mxu0 0.0
          %1916 = vmatprep.subr.mxu0 0.0
          %1917 = vmatpush1.msra.mxu0 0.0
          %1918 = vmatprep.subr.mxu0 0.0
          %1919 = vmatpush1.msra.mxu0 0.0
          %1920 = vmatprep.subr.mxu0 0.0
          %1921 = vmatpush1.msra.mxu0 0.0
          %1922 = vmatprep.subr.mxu0 0.0
          %1923 = vmatpush1.msra.mxu0 0.0
          %1924 = vmatprep.subr.mxu0 0.0
          %1925 = vmatpush1.msra.mxu0 0.0
          %1926 = vmatprep.subr.mxu0 0.0
          %1927 = vmatpush1.msra.mxu0 0.0
          %1928 = vmatprep.subr.mxu0 0.0
          %1929 = vmatpush1.msra.mxu0 0.0
          %1930 = vmatprep.subr.mxu0 0.0
          %1931 = vmatpush1.msra.mxu0 0.0
          %1932 = vmatprep.subr.mxu0 0.0
          %1933 = vmatpush1.msra.mxu0 0.0
          %1934 = vmatprep.subr.mxu0 0.0
          %1935 = vmatpush1.msra.mxu0 0.0
          %1936 = vmatprep.subr.mxu0 0.0
          %1937 = vmatpush1.msra.mxu0 0.0
          %1938 = vmatprep.subr.mxu0 0.0
          %1939 = vmatpush1.msra.mxu0 0.0
          %1940 = vmatprep.subr.mxu0 0.0
          %1941 = vmatpush1.msra.mxu0 0.0
          %1942 = vmatprep.subr.mxu0 0.0
          %1943 = vmatpush1.msra.mxu0 0.0
          %1944 = vmatprep.subr.mxu0 0.0
          %1945 = vmatpush1.msra.mxu0 0.0
          %1946 = vmatprep.subr.mxu0 0.0
          %1947 = vmatpush1.msra.mxu0 0.0
          %1948 = vmatprep.subr.mxu0 0.0
          %1949 = vmatpush1.msra.mxu0 0.0
          %1950 = vmatprep.subr.mxu0 0.0
          %1951 = vmatpush1.msra.mxu0 0.0
          %1952 = vmatprep.subr.mxu0 0.0
          %1953 = vmatpush1.msra.mxu0 0.0
          %1954 = vmatprep.subr.mxu0 0.0
          %1955 = vmatpush1.msra.mxu0 0.0
          %1956 = vmatprep.subr.mxu0 0.0
          %1957 = vmatpush1.msra.mxu0 0.0
          %1958 = vmatprep.mubr.f32.mxu0 0.0
          %v1959 = vand.u32 %v1553, 4294901760
          %1960 = vmatmul.mubr.f32.gmra.mrb[0].mxu0 %v1959
          %v1961 = vpop.f32.mrb[0].mxu0
          %v1962 = vadd.f32 %v1879, %v1961
          %v1963 = vpop.f32.mrb[0].mxu0
          %1964 = vdwg.mxu0
          %1965 = vmatprep.subr.mxu0 0.0
          %v1966 = vand.u32 %v1548, 4294901760
          %1967 = vmatpush1.msra.mxu0 %v1966
          %1968 = vmatprep.subr.mxu0 0.0
          %v1969 = vand.u32 %v1549, 4294901760
          %1970 = vmatpush1.msra.mxu0 %v1969
          %1971 = vmatprep.subr.mxu0 0.0
          %v1972 = vand.u32 %v1550, 4294901760
          %1973 = vmatpush1.msra.mxu0 %v1972
          %1974 = vmatprep.subr.mxu0 0.0
          %v1975 = vand.u32 %v1551, 4294901760
          %1976 = vmatpush1.msra.mxu0 %v1975
          %1977 = vmatprep.subr.mxu0 0.0
          %1978 = vmatpush1.msra.mxu0 0.0
          %1979 = vmatprep.subr.mxu0 0.0
          %1980 = vmatpush1.msra.mxu0 0.0
          %1981 = vmatprep.subr.mxu0 0.0
          %1982 = vmatpush1.msra.mxu0 0.0
          %1983 = vmatprep.subr.mxu0 0.0
          %1984 = vmatpush1.msra.mxu0 0.0
          %1985 = vmatprep.subr.mxu0 0.0
          %1986 = vmatpush1.msra.mxu0 0.0
          %1987 = vmatprep.subr.mxu0 0.0
          %1988 = vmatpush1.msra.mxu0 0.0
          %1989 = vmatprep.subr.mxu0 0.0
          %1990 = vmatpush1.msra.mxu0 0.0
          %1991 = vmatprep.subr.mxu0 0.0
          %1992 = vmatpush1.msra.mxu0 0.0
          %1993 = vmatprep.subr.mxu0 0.0
          %1994 = vmatpush1.msra.mxu0 0.0
          %1995 = vmatprep.subr.mxu0 0.0
          %1996 = vmatpush1.msra.mxu0 0.0
          %1997 = vmatprep.subr.mxu0 0.0
          %1998 = vmatpush1.msra.mxu0 0.0
          %1999 = vmatprep.subr.mxu0 0.0
          %2000 = vmatpush1.msra.mxu0 0.0
          %2001 = vmatprep.subr.mxu0 0.0
          %2002 = vmatpush1.msra.mxu0 0.0
          %2003 = vmatprep.subr.mxu0 0.0
          %2004 = vmatpush1.msra.mxu0 0.0
          %2005 = vmatprep.subr.mxu0 0.0
          %2006 = vmatpush1.msra.mxu0 0.0
          %2007 = vmatprep.subr.mxu0 0.0
          %2008 = vmatpush1.msra.mxu0 0.0
          %2009 = vmatprep.subr.mxu0 0.0
          %2010 = vmatpush1.msra.mxu0 0.0
          %2011 = vmatprep.subr.mxu0 0.0
          %2012 = vmatpush1.msra.mxu0 0.0
          %2013 = vmatprep.subr.mxu0 0.0
          %2014 = vmatpush1.msra.mxu0 0.0
          %2015 = vmatprep.subr.mxu0 0.0
          %2016 = vmatpush1.msra.mxu0 0.0
          %2017 = vmatprep.subr.mxu0 0.0
          %2018 = vmatpush1.msra.mxu0 0.0
          %2019 = vmatprep.subr.mxu0 0.0
          %2020 = vmatpush1.msra.mxu0 0.0
          %2021 = vmatprep.subr.mxu0 0.0
          %2022 = vmatpush1.msra.mxu0 0.0
          %2023 = vmatprep.subr.mxu0 0.0
          %2024 = vmatpush1.msra.mxu0 0.0
          %2025 = vmatprep.subr.mxu0 0.0
          %2026 = vmatpush1.msra.mxu0 0.0
          %2027 = vmatprep.subr.mxu0 0.0
          %2028 = vmatpush1.msra.mxu0 0.0
          %2029 = vmatprep.subr.mxu0 0.0
          %2030 = vmatpush1.msra.mxu0 0.0
          %2031 = vmatprep.subr.mxu0 0.0
          %2032 = vmatpush1.msra.mxu0 0.0
          %2033 = vmatprep.mubr.f32.mxu0 0.0
          %v2034 = vand.u32 %v1553, 4294901760
          %2035 = vmatmul.mubr.f32.gmra.mrb[0].mxu0 %v2034
          %v2036 = vpop.f32.mrb[0].mxu0
          %v2037 = vadd.f32 %v1962, %v2036
          %v2038 = vpop.f32.mrb[0].mxu0
          %2039 = vdwg.mxu0
          %v2040 = vsub.f32 0.0, %v2037
          %v2041 = vmul.f32 %v2040, 1.442695
          %v2042 = vpow.pop %v2041
          %v2043 = vadd.f32 %v2042, 1.0
          %v2044 = vrcp.pop %v2043
          %v2045 = vmul.f32 1.0, %v2044
          %vm2046 = vcmask 450560
          %2047 = vst.msk [vmem:[%s223] sm:$0x1] %vm2046, %v2045
        $region48: #{tpu_custom_call.1} parent=35 // pred_fallthru
          _
        %s2048 = sand.u32 %s130, 1
        %s2049 = scalar_lea.sflag [#allocation5], %s2048
        %s2050 = sand.u32 %s130, 1
        %s2051 = scalar_lea.vmem [#allocation7], %s2050
        // Predicated region
        $region49: #{tpu_custom_call.1} parent=35 // pred_check
          %p2052 = pneg %p140
        $region50: #{tpu_custom_call.1} parent=35 // pred_check_branch
          %2054 = sbr.rel (%p2052) target = $region52
        $region51: #{tpu_custom_call.1} parent=35 // pred_region
          %s2056 = ssub.s32 16, 16
          %2057 = vsyncadd %s2049, %s2056
          %s2058 = smul.addr %s23, 16
          %s2059 = scalar_lea.hbm %s4, %s2058
          %s2061 = sshll.u32 %s2051, 4
          %s2062 = int_to_ptr.vmem [resolvable:$true] %s2061
          %2064 = dma.vmem_to_hbm [thread:$0]  %s2062, 16, %s2059, %s2049
        $region52: #{tpu_custom_call.1} parent=35 // pred_fallthru
          _
      $region36: #{tpu_custom_call.1} parent=5 // pred_fallthru
        _
      %p2065 = scmp.le.s32.totalorder 2, %s14
      // Predicated region
      $region53: #{tpu_custom_call.1} parent=5 // pred_check
        %p2066 = pneg %p2065
      $region54: #{tpu_custom_call.1} parent=5 // pred_check_branch
        %2068 = sbr.rel (%p2066) target = $region56
      $region55: #{tpu_custom_call.1} parent=5 // pred_region
        %s2069 = ssub.s32 %s14, 2
        // Predicated region
        $region57: #{tpu_custom_call.1} parent=55 // pred_check
          %p2070 = pneg %p146
        $region58: #{tpu_custom_call.1} parent=55 // pred_check_branch
          %2072 = sbr.rel (%p2070) target = $region60
        $region59: #{tpu_custom_call.1} parent=55 // pred_region
          %s2073 = sand.u32 %s131, 1
          %s2074 = scalar_lea.sflag [#allocation5], %s2073
          %s2075 = sand.u32 %s131, 1
          %s2076 = scalar_lea.vmem [#allocation7], %s2075
          %2077 = dma.done %s2074, 16
        $region60: #{tpu_custom_call.1} parent=55 // pred_fallthru
          _
      $region56: #{tpu_custom_call.1} parent=5 // pred_fallthru
        _
    $region6: #{tpu_custom_call.1} parent=1 // loop_footer
      %s18 = sadd.s32 1, %s14
    $region7: #{tpu_custom_call.1} parent=1 // loop_footer_branch
      %13 = sbr.rel target = $region3
    $region8: #{tpu_custom_call.1} parent=1 // loop_exit
      _
    %2078 = vsyncpa [#allocation5], 1
    %s2079 = scalar_lea.sflag [#allocation5], 1
    %2080 = vsyncpa %s2079, 1
    %2081 = vsyncpa [#allocation6], 1
    %s2082 = scalar_lea.sflag [#allocation6], 1
    %2083 = vsyncpa %s2082, 1

</llo_original>
